<compile_context>
chip_gen: v7x
topology: tpu7x:2x2x1
jax: 0.10.0
libtpu: 0.0.40
codegen_flags: <defaults>
</compile_context>

<pallas_src>
import jax
import jax.numpy as jnp
from jax.experimental import pallas as pl
from jax.experimental.pallas import tpu as pltpu

INPUT_SIZE = 6
HIDDEN_SIZE = 6


def _lstm_fused_kernel(x_ref, w_ref, b_ref, y_ref, hn_ref, cn_ref):
    """x_ref: (T, 1, F); w_ref: (L, F+H, 4H); b_ref: (L, 1, 4H)
       y_ref: (T, 1, H); hn_ref/cn_ref: (L, 1, H).
       Gate packing order along the 4H axis is [i, f, o, g]."""
    T = x_ref.shape[0]
    L = w_ref.shape[0]
    H = HIDDEN_SIZE

    # Load the whole (tiny) sequence once; everything below stays in vregs.
    xs = [x_ref[t] for t in range(T)]            # list of (1, F)

    for layer in range(L):
        w = w_ref[layer]                         # (F+H, 4H)
        b = b_ref[layer]                         # (1, 4H)
        h = jnp.zeros((1, H), jnp.float32)
        c = jnp.zeros((1, H), jnp.float32)
        new_xs = []
        for t in range(T):
            xh = jnp.concatenate([xs[t], h], axis=-1)           # (1, F+H)
            gates = jnp.dot(xh, w, preferred_element_type=jnp.float32) + b
            sig = jax.nn.sigmoid(gates[:, : 3 * H])             # i | f | o
            g_g = jnp.tanh(gates[:, 3 * H:])                    # g
            i_g = sig[:, :H]
            f_g = sig[:, H:2 * H]
            o_g = sig[:, 2 * H:3 * H]
            c = f_g * c + i_g * g_g
            h = o_g * jnp.tanh(c)
            new_xs.append(h)
        xs = new_xs
        # Final-step states only (written once per layer).
        hn_ref[layer] = h
        cn_ref[layer] = c

    # Bulk write of the last layer's sequence output (VMEM -> one HBM DMA).
    for t in range(T):
        y_ref[t] = xs[t]


def _run_lstm(x, w_packed, b_packed):
    """x: (T, 1, F) f32; w_packed: (L, F+H, 4H); b_packed: (L, 1, 4H)."""
    T = x.shape[0]
    L = w_packed.shape[0]
    out_shapes = (
        jax.ShapeDtypeStruct((T, 1, HIDDEN_SIZE), jnp.float32),
        jax.ShapeDtypeStruct((L, 1, HIDDEN_SIZE), jnp.float32),
        jax.ShapeDtypeStruct((L, 1, HIDDEN_SIZE), jnp.float32),
    )
    return pl.pallas_call(
        _lstm_fused_kernel,
        out_shape=out_shapes,
        grid=(1,),
        in_specs=[
            pl.BlockSpec(x.shape, lambda i: (0, 0, 0)),
            pl.BlockSpec(w_packed.shape, lambda i: (0, 0, 0)),
            pl.BlockSpec(b_packed.shape, lambda i: (0, 0, 0)),
        ],
        out_specs=(
            pl.BlockSpec((T, 1, HIDDEN_SIZE), lambda i: (0, 0, 0)),
            pl.BlockSpec((L, 1, HIDDEN_SIZE), lambda i: (0, 0, 0)),
            pl.BlockSpec((L, 1, HIDDEN_SIZE), lambda i: (0, 0, 0)),
        ),
        compiler_params=pltpu.CompilerParams(
            dimension_semantics=("arbitrary",)),
    )(x, w_packed, b_packed)


def _reorder_ifog_to_ifog_out(a):
    """PyTorch gate order [i, f, g, o] -> packed order [i, f, o, g] (axis 0)."""
    i, f, g, o = jnp.split(a, 4, axis=0)
    return jnp.concatenate([i, f, o, g], axis=0)


def _pack_layer(w_ih, w_hh, b_ih, b_hh):
    """w_ih: (4H, IN), w_hh: (4H, H), biases: (4H,).
       Returns W: (IN+H, 4H) and b: (1, 4H) with gate order [i, f, o, g]."""
    w_ih_r = _reorder_ifog_to_ifog_out(w_ih)
    w_hh_r = _reorder_ifog_to_ifog_out(w_hh)
    b_r = _reorder_ifog_to_ifog_out(b_ih + b_hh)
    W = jnp.concatenate([w_ih_r.T, w_hh_r.T], axis=0)     # (IN+H, 4H)
    return W.astype(jnp.float32), b_r.reshape(1, -1).astype(jnp.float32)


def init_lstm_params(key, num_layers):
    """PyTorch nn.LSTM init: uniform(-1/sqrt(H), 1/sqrt(H)) for all params."""
    k = 1.0 / jnp.sqrt(jnp.float32(HIDDEN_SIZE))
    params = []
    for layer in range(num_layers):
        in_sz = INPUT_SIZE if layer == 0 else HIDDEN_SIZE
        key, k1, k2, k3, k4 = jax.random.split(key, 5)
        w_ih = jax.random.uniform(k1, (4 * HIDDEN_SIZE, in_sz), jnp.float32, -k, k)
        w_hh = jax.random.uniform(k2, (4 * HIDDEN_SIZE, HIDDEN_SIZE), jnp.float32, -k, k)
        b_ih = jax.random.uniform(k3, (4 * HIDDEN_SIZE,), jnp.float32, -k, k)
        b_hh = jax.random.uniform(k4, (4 * HIDDEN_SIZE,), jnp.float32, -k, k)
        params.append((w_ih, w_hh, b_ih, b_hh))
    return params


def lstm_dance_forward(sentence, params):
    """Equivalent of LSTM_Dance.forward: returns (output, (h_n, c_n))."""
    sentence = sentence.astype(jnp.float32)
    T = sentence.shape[0]
    x = sentence.reshape(T, 1, -1)               # .view(len(sentence), 1, -1)
    # All layers share IN == H == 6, so weights stack into one (L, IN+H, 4H).
    Ws, bs = [], []
    for (w_ih, w_hh, b_ih, b_hh) in params:
        assert w_ih.shape[1] == HIDDEN_SIZE == INPUT_SIZE
        W, b = _pack_layer(w_ih, w_hh, b_ih, b_hh)
        Ws.append(W)
        bs.append(b)
    w_packed = jnp.stack(Ws)                     # (L, IN+H, 4H)
    b_packed = jnp.stack(bs)                     # (L, 1, 4H)
    out, h_n, c_n = _run_lstm(x, w_packed, b_packed)
    return out, (h_n, c_n)


def _lstm_ref(x, params):
    """Pure-JAX reference (lax.scan, original PyTorch gate order) for validation."""
    out = x
    hs, cs = [], []
    for (w_ih, w_hh, b_ih, b_hh) in params:
        def step(carry, x_t):
            h, c = carry
            gates = x_t @ w_ih.T + h @ w_hh.T + b_ih + b_hh
            i, f, g, o = jnp.split(gates, 4, axis=-1)
            i = jax.nn.sigmoid(i)
            f = jax.nn.sigmoid(f)
            g = jnp.tanh(g)
            o = jax.nn.sigmoid(o)
            c_new = f * c + i * g
            h_new = o * jnp.tanh(c_new)
            return (h_new, c_new), h_new
        h0 = jnp.zeros((1, HIDDEN_SIZE), jnp.float32)
        c0 = jnp.zeros((1, HIDDEN_SIZE), jnp.float32)
        (hT, cT), ys = jax.lax.scan(step, (h0, c0), out)
        out = ys
        hs.append(hT)
        cs.append(cT)
    return out, (jnp.stack(hs), jnp.stack(cs))


if __name__ == "__main__":
    key = jax.random.PRNGKey(0)
    k_sent, k_params = jax.random.split(key)

    T = 8
    num_layers = 2
    # sentence: (T, 6) -> viewed as (T, 1, 6) inside forward
    sentence = jax.random.normal(k_sent, (T, INPUT_SIZE), dtype=jnp.float32)
    params = init_lstm_params(k_params, num_layers)

    out, (h_n, c_n) = lstm_dance_forward(sentence, params)
    jax.block_until_ready((out, h_n, c_n))

    ref_out, (ref_h, ref_c) = _lstm_ref(
        sentence.reshape(T, 1, -1).astype(jnp.float32), params)
    assert out.shape == (T, 1, HIDDEN_SIZE)
    assert h_n.shape == (num_layers, 1, HIDDEN_SIZE)
    assert c_n.shape == (num_layers, 1, HIDDEN_SIZE)
    assert jnp.allclose(out, ref_out, atol=1e-5)
    assert jnp.allclose(h_n, ref_h, atol=1e-5)
    assert jnp.allclose(c_n, ref_c, atol=1e-5)
    print("KERNEL_OK")
</pallas_src>

<mosaic_0001>
module attributes {stable_mosaic.version = 11 : i64} {
  func.func @_lstm_fused_kernel(%arg0: i32, %arg1: memref<8x1x6xf32, #tpu.memory_space<vmem>>, %arg2: memref<2x12x24xf32, #tpu.memory_space<vmem>>, %arg3: memref<2x1x24xf32, #tpu.memory_space<vmem>>, %arg4: memref<8x1x6xf32, #tpu.memory_space<vmem>>, %arg5: memref<2x1x6xf32, #tpu.memory_space<vmem>>, %arg6: memref<2x1x6xf32, #tpu.memory_space<vmem>>) attributes {dimension_semantics = [#tpu.dimension_semantics<arbitrary>], iteration_bounds = array<i64: 1>, scalar_prefetch = 0 : i64, scratch_operands = 0 : i64, tpu.core_type = #tpu.core_type<tc>, window_params = [{pipeline_mode = #tpu.pipeline_mode<synchronous>, transform_indices = @transform_0, window_bounds = array<i64: 8, 1, 6>}, {pipeline_mode = #tpu.pipeline_mode<synchronous>, transform_indices = @transform_1, window_bounds = array<i64: 2, 12, 24>}, {pipeline_mode = #tpu.pipeline_mode<synchronous>, transform_indices = @transform_2, window_bounds = array<i64: 2, 1, 24>}, {pipeline_mode = #tpu.pipeline_mode<synchronous>, transform_indices = @transform_3, window_bounds = array<i64: 8, 1, 6>}, {pipeline_mode = #tpu.pipeline_mode<synchronous>, transform_indices = @transform_4, window_bounds = array<i64: 2, 1, 6>}, {pipeline_mode = #tpu.pipeline_mode<synchronous>, transform_indices = @transform_5, window_bounds = array<i64: 2, 1, 6>}]} {
    %c0 = arith.constant 0 : index
    %c0_0 = arith.constant 0 : index
    %c0_1 = arith.constant 0 : index
    %0 = vector.load %arg1[%c0, %c0_0, %c0_1] : memref<8x1x6xf32, #tpu.memory_space<vmem>>, vector<1x1x6xf32>
    %1 = vector.shape_cast %0 : vector<1x1x6xf32> to vector<1x6xf32>
    %c1 = arith.constant 1 : index
    %c0_2 = arith.constant 0 : index
    %c0_3 = arith.constant 0 : index
    %2 = vector.load %arg1[%c1, %c0_2, %c0_3] : memref<8x1x6xf32, #tpu.memory_space<vmem>>, vector<1x1x6xf32>
    %3 = vector.shape_cast %2 : vector<1x1x6xf32> to vector<1x6xf32>
    %c2 = arith.constant 2 : index
    %c0_4 = arith.constant 0 : index
    %c0_5 = arith.constant 0 : index
    %4 = vector.load %arg1[%c2, %c0_4, %c0_5] : memref<8x1x6xf32, #tpu.memory_space<vmem>>, vector<1x1x6xf32>
    %5 = vector.shape_cast %4 : vector<1x1x6xf32> to vector<1x6xf32>
    %c3 = arith.constant 3 : index
    %c0_6 = arith.constant 0 : index
    %c0_7 = arith.constant 0 : index
    %6 = vector.load %arg1[%c3, %c0_6, %c0_7] : memref<8x1x6xf32, #tpu.memory_space<vmem>>, vector<1x1x6xf32>
    %7 = vector.shape_cast %6 : vector<1x1x6xf32> to vector<1x6xf32>
    %c4 = arith.constant 4 : index
    %c0_8 = arith.constant 0 : index
    %c0_9 = arith.constant 0 : index
    %8 = vector.load %arg1[%c4, %c0_8, %c0_9] : memref<8x1x6xf32, #tpu.memory_space<vmem>>, vector<1x1x6xf32>
    %9 = vector.shape_cast %8 : vector<1x1x6xf32> to vector<1x6xf32>
    %c5 = arith.constant 5 : index
    %c0_10 = arith.constant 0 : index
    %c0_11 = arith.constant 0 : index
    %10 = vector.load %arg1[%c5, %c0_10, %c0_11] : memref<8x1x6xf32, #tpu.memory_space<vmem>>, vector<1x1x6xf32>
    %11 = vector.shape_cast %10 : vector<1x1x6xf32> to vector<1x6xf32>
    %c6 = arith.constant 6 : index
    %c0_12 = arith.constant 0 : index
    %c0_13 = arith.constant 0 : index
    %12 = vector.load %arg1[%c6, %c0_12, %c0_13] : memref<8x1x6xf32, #tpu.memory_space<vmem>>, vector<1x1x6xf32>
    %13 = vector.shape_cast %12 : vector<1x1x6xf32> to vector<1x6xf32>
    %c7 = arith.constant 7 : index
    %c0_14 = arith.constant 0 : index
    %c0_15 = arith.constant 0 : index
    %14 = vector.load %arg1[%c7, %c0_14, %c0_15] : memref<8x1x6xf32, #tpu.memory_space<vmem>>, vector<1x1x6xf32>
    %15 = vector.shape_cast %14 : vector<1x1x6xf32> to vector<1x6xf32>
    %c0_16 = arith.constant 0 : index
    %c0_17 = arith.constant 0 : index
    %c0_18 = arith.constant 0 : index
    %16 = vector.load %arg2[%c0_16, %c0_17, %c0_18] : memref<2x12x24xf32, #tpu.memory_space<vmem>>, vector<1x12x24xf32>
    %17 = vector.shape_cast %16 : vector<1x12x24xf32> to vector<12x24xf32>
    %c0_19 = arith.constant 0 : index
    %c0_20 = arith.constant 0 : index
    %c0_21 = arith.constant 0 : index
    %18 = vector.load %arg3[%c0_19, %c0_20, %c0_21] : memref<2x1x24xf32, #tpu.memory_space<vmem>>, vector<1x1x24xf32>
    %19 = vector.shape_cast %18 : vector<1x1x24xf32> to vector<1x24xf32>
    %cst = arith.constant 0.000000e+00 : f32
    %20 = vector.broadcast %cst : f32 to vector<1x6xf32>
    %cst_22 = arith.constant 0.000000e+00 : f32
    %21 = vector.broadcast %cst_22 : f32 to vector<1x6xf32>
    %22 = tpu.concatenate %1, %20 in 1 : vector<1x6xf32>, vector<1x6xf32> -> vector<1x12xf32>
    %cst_23 = arith.constant dense<0.000000e+00> : vector<1x24xf32>
    %23 = tpu.matmul %22, %17, %cst_23 {dimension_numbers = #tpu.dot_dimension_numbers<[1], [0], [0], [1], [0, 0, 1, 1], [], []>} : vector<1x12xf32>, vector<12x24xf32>, vector<1x24xf32> -> vector<1x24xf32>
    %24 = arith.addf %23, %19 : vector<1x24xf32>
    %25 = vector.extract_strided_slice %24 {offsets = [0, 0], sizes = [1, 18], strides = [1, 1]} : vector<1x24xf32> to vector<1x18xf32>
    %26 = arith.negf %25 : vector<1x18xf32>
    %27 = math.exp %26 : vector<1x18xf32>
    %cst_24 = arith.constant 1.000000e+00 : f32
    %28 = vector.broadcast %cst_24 : f32 to vector<1x18xf32>
    %29 = arith.addf %28, %27 : vector<1x18xf32>
    %30 = arith.divf %28, %29 : vector<1x18xf32>
    %31 = vector.extract_strided_slice %24 {offsets = [0, 18], sizes = [1, 6], strides = [1, 1]} : vector<1x24xf32> to vector<1x6xf32>
    %32 = math.tanh %31 : vector<1x6xf32>
    %33 = vector.extract_strided_slice %30 {offsets = [0, 0], sizes = [1, 6], strides = [1, 1]} : vector<1x18xf32> to vector<1x6xf32>
    %34 = vector.extract_strided_slice %30 {offsets = [0, 6], sizes = [1, 6], strides = [1, 1]} : vector<1x18xf32> to vector<1x6xf32>
    %35 = vector.extract_strided_slice %30 {offsets = [0, 12], sizes = [1, 6], strides = [1, 1]} : vector<1x18xf32> to vector<1x6xf32>
    %36 = arith.mulf %34, %21 : vector<1x6xf32>
    %37 = arith.mulf %33, %32 : vector<1x6xf32>
    %38 = arith.addf %36, %37 : vector<1x6xf32>
    %39 = math.tanh %38 : vector<1x6xf32>
    %40 = arith.mulf %35, %39 : vector<1x6xf32>
    %41 = tpu.concatenate %3, %40 in 1 : vector<1x6xf32>, vector<1x6xf32> -> vector<1x12xf32>
    %cst_25 = arith.constant dense<0.000000e+00> : vector<1x24xf32>
    %42 = tpu.matmul %41, %17, %cst_25 {dimension_numbers = #tpu.dot_dimension_numbers<[1], [0], [0], [1], [0, 0, 1, 1], [], []>} : vector<1x12xf32>, vector<12x24xf32>, vector<1x24xf32> -> vector<1x24xf32>
    %43 = arith.addf %42, %19 : vector<1x24xf32>
    %44 = vector.extract_strided_slice %43 {offsets = [0, 0], sizes = [1, 18], strides = [1, 1]} : vector<1x24xf32> to vector<1x18xf32>
    %45 = arith.negf %44 : vector<1x18xf32>
    %46 = math.exp %45 : vector<1x18xf32>
    %cst_26 = arith.constant 1.000000e+00 : f32
    %47 = vector.broadcast %cst_26 : f32 to vector<1x18xf32>
    %48 = arith.addf %47, %46 : vector<1x18xf32>
    %49 = arith.divf %47, %48 : vector<1x18xf32>
    %50 = vector.extract_strided_slice %43 {offsets = [0, 18], sizes = [1, 6], strides = [1, 1]} : vector<1x24xf32> to vector<1x6xf32>
    %51 = math.tanh %50 : vector<1x6xf32>
    %52 = vector.extract_strided_slice %49 {offsets = [0, 0], sizes = [1, 6], strides = [1, 1]} : vector<1x18xf32> to vector<1x6xf32>
    %53 = vector.extract_strided_slice %49 {offsets = [0, 6], sizes = [1, 6], strides = [1, 1]} : vector<1x18xf32> to vector<1x6xf32>
    %54 = vector.extract_strided_slice %49 {offsets = [0, 12], sizes = [1, 6], strides = [1, 1]} : vector<1x18xf32> to vector<1x6xf32>
    %55 = arith.mulf %53, %38 : vector<1x6xf32>
    %56 = arith.mulf %52, %51 : vector<1x6xf32>
    %57 = arith.addf %55, %56 : vector<1x6xf32>
    %58 = math.tanh %57 : vector<1x6xf32>
    %59 = arith.mulf %54, %58 : vector<1x6xf32>
    %60 = tpu.concatenate %5, %59 in 1 : vector<1x6xf32>, vector<1x6xf32> -> vector<1x12xf32>
    %cst_27 = arith.constant dense<0.000000e+00> : vector<1x24xf32>
    %61 = tpu.matmul %60, %17, %cst_27 {dimension_numbers = #tpu.dot_dimension_numbers<[1], [0], [0], [1], [0, 0, 1, 1], [], []>} : vector<1x12xf32>, vector<12x24xf32>, vector<1x24xf32> -> vector<1x24xf32>
    %62 = arith.addf %61, %19 : vector<1x24xf32>
    %63 = vector.extract_strided_slice %62 {offsets = [0, 0], sizes = [1, 18], strides = [1, 1]} : vector<1x24xf32> to vector<1x18xf32>
    %64 = arith.negf %63 : vector<1x18xf32>
    %65 = math.exp %64 : vector<1x18xf32>
    %cst_28 = arith.constant 1.000000e+00 : f32
    %66 = vector.broadcast %cst_28 : f32 to vector<1x18xf32>
    %67 = arith.addf %66, %65 : vector<1x18xf32>
    %68 = arith.divf %66, %67 : vector<1x18xf32>
    %69 = vector.extract_strided_slice %62 {offsets = [0, 18], sizes = [1, 6], strides = [1, 1]} : vector<1x24xf32> to vector<1x6xf32>
    %70 = math.tanh %69 : vector<1x6xf32>
    %71 = vector.extract_strided_slice %68 {offsets = [0, 0], sizes = [1, 6], strides = [1, 1]} : vector<1x18xf32> to vector<1x6xf32>
    %72 = vector.extract_strided_slice %68 {offsets = [0, 6], sizes = [1, 6], strides = [1, 1]} : vector<1x18xf32> to vector<1x6xf32>
    %73 = vector.extract_strided_slice %68 {offsets = [0, 12], sizes = [1, 6], strides = [1, 1]} : vector<1x18xf32> to vector<1x6xf32>
    %74 = arith.mulf %72, %57 : vector<1x6xf32>
    %75 = arith.mulf %71, %70 : vector<1x6xf32>
    %76 = arith.addf %74, %75 : vector<1x6xf32>
    %77 = math.tanh %76 : vector<1x6xf32>
    %78 = arith.mulf %73, %77 : vector<1x6xf32>
    %79 = tpu.concatenate %7, %78 in 1 : vector<1x6xf32>, vector<1x6xf32> -> vector<1x12xf32>
    %cst_29 = arith.constant dense<0.000000e+00> : vector<1x24xf32>
    %80 = tpu.matmul %79, %17, %cst_29 {dimension_numbers = #tpu.dot_dimension_numbers<[1], [0], [0], [1], [0, 0, 1, 1], [], []>} : vector<1x12xf32>, vector<12x24xf32>, vector<1x24xf32> -> vector<1x24xf32>
    %81 = arith.addf %80, %19 : vector<1x24xf32>
    %82 = vector.extract_strided_slice %81 {offsets = [0, 0], sizes = [1, 18], strides = [1, 1]} : vector<1x24xf32> to vector<1x18xf32>
    %83 = arith.negf %82 : vector<1x18xf32>
    %84 = math.exp %83 : vector<1x18xf32>
    %cst_30 = arith.constant 1.000000e+00 : f32
    %85 = vector.broadcast %cst_30 : f32 to vector<1x18xf32>
    %86 = arith.addf %85, %84 : vector<1x18xf32>
    %87 = arith.divf %85, %86 : vector<1x18xf32>
    %88 = vector.extract_strided_slice %81 {offsets = [0, 18], sizes = [1, 6], strides = [1, 1]} : vector<1x24xf32> to vector<1x6xf32>
    %89 = math.tanh %88 : vector<1x6xf32>
    %90 = vector.extract_strided_slice %87 {offsets = [0, 0], sizes = [1, 6], strides = [1, 1]} : vector<1x18xf32> to vector<1x6xf32>
    %91 = vector.extract_strided_slice %87 {offsets = [0, 6], sizes = [1, 6], strides = [1, 1]} : vector<1x18xf32> to vector<1x6xf32>
    %92 = vector.extract_strided_slice %87 {offsets = [0, 12], sizes = [1, 6], strides = [1, 1]} : vector<1x18xf32> to vector<1x6xf32>
    %93 = arith.mulf %91, %76 : vector<1x6xf32>
    %94 = arith.mulf %90, %89 : vector<1x6xf32>
    %95 = arith.addf %93, %94 : vector<1x6xf32>
    %96 = math.tanh %95 : vector<1x6xf32>
    %97 = arith.mulf %92, %96 : vector<1x6xf32>
    %98 = tpu.concatenate %9, %97 in 1 : vector<1x6xf32>, vector<1x6xf32> -> vector<1x12xf32>
    %cst_31 = arith.constant dense<0.000000e+00> : vector<1x24xf32>
    %99 = tpu.matmul %98, %17, %cst_31 {dimension_numbers = #tpu.dot_dimension_numbers<[1], [0], [0], [1], [0, 0, 1, 1], [], []>} : vector<1x12xf32>, vector<12x24xf32>, vector<1x24xf32> -> vector<1x24xf32>
    %100 = arith.addf %99, %19 : vector<1x24xf32>
    %101 = vector.extract_strided_slice %100 {offsets = [0, 0], sizes = [1, 18], strides = [1, 1]} : vector<1x24xf32> to vector<1x18xf32>
    %102 = arith.negf %101 : vector<1x18xf32>
    %103 = math.exp %102 : vector<1x18xf32>
    %cst_32 = arith.constant 1.000000e+00 : f32
    %104 = vector.broadcast %cst_32 : f32 to vector<1x18xf32>
    %105 = arith.addf %104, %103 : vector<1x18xf32>
    %106 = arith.divf %104, %105 : vector<1x18xf32>
    %107 = vector.extract_strided_slice %100 {offsets = [0, 18], sizes = [1, 6], strides = [1, 1]} : vector<1x24xf32> to vector<1x6xf32>
    %108 = math.tanh %107 : vector<1x6xf32>
    %109 = vector.extract_strided_slice %106 {offsets = [0, 0], sizes = [1, 6], strides = [1, 1]} : vector<1x18xf32> to vector<1x6xf32>
    %110 = vector.extract_strided_slice %106 {offsets = [0, 6], sizes = [1, 6], strides = [1, 1]} : vector<1x18xf32> to vector<1x6xf32>
    %111 = vector.extract_strided_slice %106 {offsets = [0, 12], sizes = [1, 6], strides = [1, 1]} : vector<1x18xf32> to vector<1x6xf32>
    %112 = arith.mulf %110, %95 : vector<1x6xf32>
    %113 = arith.mulf %109, %108 : vector<1x6xf32>
    %114 = arith.addf %112, %113 : vector<1x6xf32>
    %115 = math.tanh %114 : vector<1x6xf32>
    %116 = arith.mulf %111, %115 : vector<1x6xf32>
    %117 = tpu.concatenate %11, %116 in 1 : vector<1x6xf32>, vector<1x6xf32> -> vector<1x12xf32>
    %cst_33 = arith.constant dense<0.000000e+00> : vector<1x24xf32>
    %118 = tpu.matmul %117, %17, %cst_33 {dimension_numbers = #tpu.dot_dimension_numbers<[1], [0], [0], [1], [0, 0, 1, 1], [], []>} : vector<1x12xf32>, vector<12x24xf32>, vector<1x24xf32> -> vector<1x24xf32>
    %119 = arith.addf %118, %19 : vector<1x24xf32>
    %120 = vector.extract_strided_slice %119 {offsets = [0, 0], sizes = [1, 18], strides = [1, 1]} : vector<1x24xf32> to vector<1x18xf32>
    %121 = arith.negf %120 : vector<1x18xf32>
    %122 = math.exp %121 : vector<1x18xf32>
    %cst_34 = arith.constant 1.000000e+00 : f32
    %123 = vector.broadcast %cst_34 : f32 to vector<1x18xf32>
    %124 = arith.addf %123, %122 : vector<1x18xf32>
    %125 = arith.divf %123, %124 : vector<1x18xf32>
    %126 = vector.extract_strided_slice %119 {offsets = [0, 18], sizes = [1, 6], strides = [1, 1]} : vector<1x24xf32> to vector<1x6xf32>
    %127 = math.tanh %126 : vector<1x6xf32>
    %128 = vector.extract_strided_slice %125 {offsets = [0, 0], sizes = [1, 6], strides = [1, 1]} : vector<1x18xf32> to vector<1x6xf32>
    %129 = vector.extract_strided_slice %125 {offsets = [0, 6], sizes = [1, 6], strides = [1, 1]} : vector<1x18xf32> to vector<1x6xf32>
    %130 = vector.extract_strided_slice %125 {offsets = [0, 12], sizes = [1, 6], strides = [1, 1]} : vector<1x18xf32> to vector<1x6xf32>
    %131 = arith.mulf %129, %114 : vector<1x6xf32>
    %132 = arith.mulf %128, %127 : vector<1x6xf32>
    %133 = arith.addf %131, %132 : vector<1x6xf32>
    %134 = math.tanh %133 : vector<1x6xf32>
    %135 = arith.mulf %130, %134 : vector<1x6xf32>
    %136 = tpu.concatenate %13, %135 in 1 : vector<1x6xf32>, vector<1x6xf32> -> vector<1x12xf32>
    %cst_35 = arith.constant dense<0.000000e+00> : vector<1x24xf32>
    %137 = tpu.matmul %136, %17, %cst_35 {dimension_numbers = #tpu.dot_dimension_numbers<[1], [0], [0], [1], [0, 0, 1, 1], [], []>} : vector<1x12xf32>, vector<12x24xf32>, vector<1x24xf32> -> vector<1x24xf32>
    %138 = arith.addf %137, %19 : vector<1x24xf32>
    %139 = vector.extract_strided_slice %138 {offsets = [0, 0], sizes = [1, 18], strides = [1, 1]} : vector<1x24xf32> to vector<1x18xf32>
    %140 = arith.negf %139 : vector<1x18xf32>
    %141 = math.exp %140 : vector<1x18xf32>
    %cst_36 = arith.constant 1.000000e+00 : f32
    %142 = vector.broadcast %cst_36 : f32 to vector<1x18xf32>
    %143 = arith.addf %142, %141 : vector<1x18xf32>
    %144 = arith.divf %142, %143 : vector<1x18xf32>
    %145 = vector.extract_strided_slice %138 {offsets = [0, 18], sizes = [1, 6], strides = [1, 1]} : vector<1x24xf32> to vector<1x6xf32>
    %146 = math.tanh %145 : vector<1x6xf32>
    %147 = vector.extract_strided_slice %144 {offsets = [0, 0], sizes = [1, 6], strides = [1, 1]} : vector<1x18xf32> to vector<1x6xf32>
    %148 = vector.extract_strided_slice %144 {offsets = [0, 6], sizes = [1, 6], strides = [1, 1]} : vector<1x18xf32> to vector<1x6xf32>
    %149 = vector.extract_strided_slice %144 {offsets = [0, 12], sizes = [1, 6], strides = [1, 1]} : vector<1x18xf32> to vector<1x6xf32>
    %150 = arith.mulf %148, %133 : vector<1x6xf32>
    %151 = arith.mulf %147, %146 : vector<1x6xf32>
    %152 = arith.addf %150, %151 : vector<1x6xf32>
    %153 = math.tanh %152 : vector<1x6xf32>
    %154 = arith.mulf %149, %153 : vector<1x6xf32>
    %155 = tpu.concatenate %15, %154 in 1 : vector<1x6xf32>, vector<1x6xf32> -> vector<1x12xf32>
    %cst_37 = arith.constant dense<0.000000e+00> : vector<1x24xf32>
    %156 = tpu.matmul %155, %17, %cst_37 {dimension_numbers = #tpu.dot_dimension_numbers<[1], [0], [0], [1], [0, 0, 1, 1], [], []>} : vector<1x12xf32>, vector<12x24xf32>, vector<1x24xf32> -> vector<1x24xf32>
    %157 = arith.addf %156, %19 : vector<1x24xf32>
    %158 = vector.extract_strided_slice %157 {offsets = [0, 0], sizes = [1, 18], strides = [1, 1]} : vector<1x24xf32> to vector<1x18xf32>
    %159 = arith.negf %158 : vector<1x18xf32>
    %160 = math.exp %159 : vector<1x18xf32>
    %cst_38 = arith.constant 1.000000e+00 : f32
    %161 = vector.broadcast %cst_38 : f32 to vector<1x18xf32>
    %162 = arith.addf %161, %160 : vector<1x18xf32>
    %163 = arith.divf %161, %162 : vector<1x18xf32>
    %164 = vector.extract_strided_slice %157 {offsets = [0, 18], sizes = [1, 6], strides = [1, 1]} : vector<1x24xf32> to vector<1x6xf32>
    %165 = math.tanh %164 : vector<1x6xf32>
    %166 = vector.extract_strided_slice %163 {offsets = [0, 0], sizes = [1, 6], strides = [1, 1]} : vector<1x18xf32> to vector<1x6xf32>
    %167 = vector.extract_strided_slice %163 {offsets = [0, 6], sizes = [1, 6], strides = [1, 1]} : vector<1x18xf32> to vector<1x6xf32>
    %168 = vector.extract_strided_slice %163 {offsets = [0, 12], sizes = [1, 6], strides = [1, 1]} : vector<1x18xf32> to vector<1x6xf32>
    %169 = arith.mulf %167, %152 : vector<1x6xf32>
    %170 = arith.mulf %166, %165 : vector<1x6xf32>
    %171 = arith.addf %169, %170 : vector<1x6xf32>
    %172 = math.tanh %171 : vector<1x6xf32>
    %173 = arith.mulf %168, %172 : vector<1x6xf32>
    %c0_39 = arith.constant 0 : index
    %c0_40 = arith.constant 0 : index
    %c0_41 = arith.constant 0 : index
    %174 = vector.load %arg5[%c0_39, %c0_40, %c0_41] : memref<2x1x6xf32, #tpu.memory_space<vmem>>, vector<1x1x6xf32>
    %175 = vector.shape_cast %174 : vector<1x1x6xf32> to vector<1x6xf32>
    %176 = vector.shape_cast %173 : vector<1x6xf32> to vector<1x1x6xf32>
    tpu.vector_store %arg5[%c0_39, %c0_40, %c0_41], %176 {strides = array<i32>} : memref<2x1x6xf32, #tpu.memory_space<vmem>>, vector<1x1x6xf32>,
    %c0_42 = arith.constant 0 : index
    %c0_43 = arith.constant 0 : index
    %c0_44 = arith.constant 0 : index
    %177 = vector.load %arg6[%c0_42, %c0_43, %c0_44] : memref<2x1x6xf32, #tpu.memory_space<vmem>>, vector<1x1x6xf32>
    %178 = vector.shape_cast %177 : vector<1x1x6xf32> to vector<1x6xf32>
    %179 = vector.shape_cast %171 : vector<1x6xf32> to vector<1x1x6xf32>
    tpu.vector_store %arg6[%c0_42, %c0_43, %c0_44], %179 {strides = array<i32>} : memref<2x1x6xf32, #tpu.memory_space<vmem>>, vector<1x1x6xf32>,
    %c1_45 = arith.constant 1 : index
    %c0_46 = arith.constant 0 : index
    %c0_47 = arith.constant 0 : index
    %180 = vector.load %arg2[%c1_45, %c0_46, %c0_47] : memref<2x12x24xf32, #tpu.memory_space<vmem>>, vector<1x12x24xf32>
    %181 = vector.shape_cast %180 : vector<1x12x24xf32> to vector<12x24xf32>
    %c1_48 = arith.constant 1 : index
    %c0_49 = arith.constant 0 : index
    %c0_50 = arith.constant 0 : index
    %182 = vector.load %arg3[%c1_48, %c0_49, %c0_50] : memref<2x1x24xf32, #tpu.memory_space<vmem>>, vector<1x1x24xf32>
    %183 = vector.shape_cast %182 : vector<1x1x24xf32> to vector<1x24xf32>
    %cst_51 = arith.constant 0.000000e+00 : f32
    %184 = vector.broadcast %cst_51 : f32 to vector<1x6xf32>
    %cst_52 = arith.constant 0.000000e+00 : f32
    %185 = vector.broadcast %cst_52 : f32 to vector<1x6xf32>
    %186 = tpu.concatenate %40, %184 in 1 : vector<1x6xf32>, vector<1x6xf32> -> vector<1x12xf32>
    %cst_53 = arith.constant dense<0.000000e+00> : vector<1x24xf32>
    %187 = tpu.matmul %186, %181, %cst_53 {dimension_numbers = #tpu.dot_dimension_numbers<[1], [0], [0], [1], [0, 0, 1, 1], [], []>} : vector<1x12xf32>, vector<12x24xf32>, vector<1x24xf32> -> vector<1x24xf32>
    %188 = arith.addf %187, %183 : vector<1x24xf32>
    %189 = vector.extract_strided_slice %188 {offsets = [0, 0], sizes = [1, 18], strides = [1, 1]} : vector<1x24xf32> to vector<1x18xf32>
    %190 = arith.negf %189 : vector<1x18xf32>
    %191 = math.exp %190 : vector<1x18xf32>
    %cst_54 = arith.constant 1.000000e+00 : f32
    %192 = vector.broadcast %cst_54 : f32 to vector<1x18xf32>
    %193 = arith.addf %192, %191 : vector<1x18xf32>
    %194 = arith.divf %192, %193 : vector<1x18xf32>
    %195 = vector.extract_strided_slice %188 {offsets = [0, 18], sizes = [1, 6], strides = [1, 1]} : vector<1x24xf32> to vector<1x6xf32>
    %196 = math.tanh %195 : vector<1x6xf32>
    %197 = vector.extract_strided_slice %194 {offsets = [0, 0], sizes = [1, 6], strides = [1, 1]} : vector<1x18xf32> to vector<1x6xf32>
    %198 = vector.extract_strided_slice %194 {offsets = [0, 6], sizes = [1, 6], strides = [1, 1]} : vector<1x18xf32> to vector<1x6xf32>
    %199 = vector.extract_strided_slice %194 {offsets = [0, 12], sizes = [1, 6], strides = [1, 1]} : vector<1x18xf32> to vector<1x6xf32>
    %200 = arith.mulf %198, %185 : vector<1x6xf32>
    %201 = arith.mulf %197, %196 : vector<1x6xf32>
    %202 = arith.addf %200, %201 : vector<1x6xf32>
    %203 = math.tanh %202 : vector<1x6xf32>
    %204 = arith.mulf %199, %203 : vector<1x6xf32>
    %205 = tpu.concatenate %59, %204 in 1 : vector<1x6xf32>, vector<1x6xf32> -> vector<1x12xf32>
    %cst_55 = arith.constant dense<0.000000e+00> : vector<1x24xf32>
    %206 = tpu.matmul %205, %181, %cst_55 {dimension_numbers = #tpu.dot_dimension_numbers<[1], [0], [0], [1], [0, 0, 1, 1], [], []>} : vector<1x12xf32>, vector<12x24xf32>, vector<1x24xf32> -> vector<1x24xf32>
    %207 = arith.addf %206, %183 : vector<1x24xf32>
    %208 = vector.extract_strided_slice %207 {offsets = [0, 0], sizes = [1, 18], strides = [1, 1]} : vector<1x24xf32> to vector<1x18xf32>
    %209 = arith.negf %208 : vector<1x18xf32>
    %210 = math.exp %209 : vector<1x18xf32>
    %cst_56 = arith.constant 1.000000e+00 : f32
    %211 = vector.broadcast %cst_56 : f32 to vector<1x18xf32>
    %212 = arith.addf %211, %210 : vector<1x18xf32>
    %213 = arith.divf %211, %212 : vector<1x18xf32>
    %214 = vector.extract_strided_slice %207 {offsets = [0, 18], sizes = [1, 6], strides = [1, 1]} : vector<1x24xf32> to vector<1x6xf32>
    %215 = math.tanh %214 : vector<1x6xf32>
    %216 = vector.extract_strided_slice %213 {offsets = [0, 0], sizes = [1, 6], strides = [1, 1]} : vector<1x18xf32> to vector<1x6xf32>
    %217 = vector.extract_strided_slice %213 {offsets = [0, 6], sizes = [1, 6], strides = [1, 1]} : vector<1x18xf32> to vector<1x6xf32>
    %218 = vector.extract_strided_slice %213 {offsets = [0, 12], sizes = [1, 6], strides = [1, 1]} : vector<1x18xf32> to vector<1x6xf32>
    %219 = arith.mulf %217, %202 : vector<1x6xf32>
    %220 = arith.mulf %216, %215 : vector<1x6xf32>
    %221 = arith.addf %219, %220 : vector<1x6xf32>
    %222 = math.tanh %221 : vector<1x6xf32>
    %223 = arith.mulf %218, %222 : vector<1x6xf32>
    %224 = tpu.concatenate %78, %223 in 1 : vector<1x6xf32>, vector<1x6xf32> -> vector<1x12xf32>
    %cst_57 = arith.constant dense<0.000000e+00> : vector<1x24xf32>
    %225 = tpu.matmul %224, %181, %cst_57 {dimension_numbers = #tpu.dot_dimension_numbers<[1], [0], [0], [1], [0, 0, 1, 1], [], []>} : vector<1x12xf32>, vector<12x24xf32>, vector<1x24xf32> -> vector<1x24xf32>
    %226 = arith.addf %225, %183 : vector<1x24xf32>
    %227 = vector.extract_strided_slice %226 {offsets = [0, 0], sizes = [1, 18], strides = [1, 1]} : vector<1x24xf32> to vector<1x18xf32>
    %228 = arith.negf %227 : vector<1x18xf32>
    %229 = math.exp %228 : vector<1x18xf32>
    %cst_58 = arith.constant 1.000000e+00 : f32
    %230 = vector.broadcast %cst_58 : f32 to vector<1x18xf32>
    %231 = arith.addf %230, %229 : vector<1x18xf32>
    %232 = arith.divf %230, %231 : vector<1x18xf32>
    %233 = vector.extract_strided_slice %226 {offsets = [0, 18], sizes = [1, 6], strides = [1, 1]} : vector<1x24xf32> to vector<1x6xf32>
    %234 = math.tanh %233 : vector<1x6xf32>
    %235 = vector.extract_strided_slice %232 {offsets = [0, 0], sizes = [1, 6], strides = [1, 1]} : vector<1x18xf32> to vector<1x6xf32>
    %236 = vector.extract_strided_slice %232 {offsets = [0, 6], sizes = [1, 6], strides = [1, 1]} : vector<1x18xf32> to vector<1x6xf32>
    %237 = vector.extract_strided_slice %232 {offsets = [0, 12], sizes = [1, 6], strides = [1, 1]} : vector<1x18xf32> to vector<1x6xf32>
    %238 = arith.mulf %236, %221 : vector<1x6xf32>
    %239 = arith.mulf %235, %234 : vector<1x6xf32>
    %240 = arith.addf %238, %239 : vector<1x6xf32>
    %241 = math.tanh %240 : vector<1x6xf32>
    %242 = arith.mulf %237, %241 : vector<1x6xf32>
    %243 = tpu.concatenate %97, %242 in 1 : vector<1x6xf32>, vector<1x6xf32> -> vector<1x12xf32>
    %cst_59 = arith.constant dense<0.000000e+00> : vector<1x24xf32>
    %244 = tpu.matmul %243, %181, %cst_59 {dimension_numbers = #tpu.dot_dimension_numbers<[1], [0], [0], [1], [0, 0, 1, 1], [], []>} : vector<1x12xf32>, vector<12x24xf32>, vector<1x24xf32> -> vector<1x24xf32>
    %245 = arith.addf %244, %183 : vector<1x24xf32>
    %246 = vector.extract_strided_slice %245 {offsets = [0, 0], sizes = [1, 18], strides = [1, 1]} : vector<1x24xf32> to vector<1x18xf32>
    %247 = arith.negf %246 : vector<1x18xf32>
    %248 = math.exp %247 : vector<1x18xf32>
    %cst_60 = arith.constant 1.000000e+00 : f32
    %249 = vector.broadcast %cst_60 : f32 to vector<1x18xf32>
    %250 = arith.addf %249, %248 : vector<1x18xf32>
    %251 = arith.divf %249, %250 : vector<1x18xf32>
    %252 = vector.extract_strided_slice %245 {offsets = [0, 18], sizes = [1, 6], strides = [1, 1]} : vector<1x24xf32> to vector<1x6xf32>
    %253 = math.tanh %252 : vector<1x6xf32>
    %254 = vector.extract_strided_slice %251 {offsets = [0, 0], sizes = [1, 6], strides = [1, 1]} : vector<1x18xf32> to vector<1x6xf32>
    %255 = vector.extract_strided_slice %251 {offsets = [0, 6], sizes = [1, 6], strides = [1, 1]} : vector<1x18xf32> to vector<1x6xf32>
    %256 = vector.extract_strided_slice %251 {offsets = [0, 12], sizes = [1, 6], strides = [1, 1]} : vector<1x18xf32> to vector<1x6xf32>
    %257 = arith.mulf %255, %240 : vector<1x6xf32>
    %258 = arith.mulf %254, %253 : vector<1x6xf32>
    %259 = arith.addf %257, %258 : vector<1x6xf32>
    %260 = math.tanh %259 : vector<1x6xf32>
    %261 = arith.mulf %256, %260 : vector<1x6xf32>
    %262 = tpu.concatenate %116, %261 in 1 : vector<1x6xf32>, vector<1x6xf32> -> vector<1x12xf32>
    %cst_61 = arith.constant dense<0.000000e+00> : vector<1x24xf32>
    %263 = tpu.matmul %262, %181, %cst_61 {dimension_numbers = #tpu.dot_dimension_numbers<[1], [0], [0], [1], [0, 0, 1, 1], [], []>} : vector<1x12xf32>, vector<12x24xf32>, vector<1x24xf32> -> vector<1x24xf32>
    %264 = arith.addf %263, %183 : vector<1x24xf32>
    %265 = vector.extract_strided_slice %264 {offsets = [0, 0], sizes = [1, 18], strides = [1, 1]} : vector<1x24xf32> to vector<1x18xf32>
    %266 = arith.negf %265 : vector<1x18xf32>
    %267 = math.exp %266 : vector<1x18xf32>
    %cst_62 = arith.constant 1.000000e+00 : f32
    %268 = vector.broadcast %cst_62 : f32 to vector<1x18xf32>
    %269 = arith.addf %268, %267 : vector<1x18xf32>
    %270 = arith.divf %268, %269 : vector<1x18xf32>
    %271 = vector.extract_strided_slice %264 {offsets = [0, 18], sizes = [1, 6], strides = [1, 1]} : vector<1x24xf32> to vector<1x6xf32>
    %272 = math.tanh %271 : vector<1x6xf32>
    %273 = vector.extract_strided_slice %270 {offsets = [0, 0], sizes = [1, 6], strides = [1, 1]} : vector<1x18xf32> to vector<1x6xf32>
    %274 = vector.extract_strided_slice %270 {offsets = [0, 6], sizes = [1, 6], strides = [1, 1]} : vector<1x18xf32> to vector<1x6xf32>
    %275 = vector.extract_strided_slice %270 {offsets = [0, 12], sizes = [1, 6], strides = [1, 1]} : vector<1x18xf32> to vector<1x6xf32>
    %276 = arith.mulf %274, %259 : vector<1x6xf32>
    %277 = arith.mulf %273, %272 : vector<1x6xf32>
    %278 = arith.addf %276, %277 : vector<1x6xf32>
    %279 = math.tanh %278 : vector<1x6xf32>
    %280 = arith.mulf %275, %279 : vector<1x6xf32>
    %281 = tpu.concatenate %135, %280 in 1 : vector<1x6xf32>, vector<1x6xf32> -> vector<1x12xf32>
    %cst_63 = arith.constant dense<0.000000e+00> : vector<1x24xf32>
    %282 = tpu.matmul %281, %181, %cst_63 {dimension_numbers = #tpu.dot_dimension_numbers<[1], [0], [0], [1], [0, 0, 1, 1], [], []>} : vector<1x12xf32>, vector<12x24xf32>, vector<1x24xf32> -> vector<1x24xf32>
    %283 = arith.addf %282, %183 : vector<1x24xf32>
    %284 = vector.extract_strided_slice %283 {offsets = [0, 0], sizes = [1, 18], strides = [1, 1]} : vector<1x24xf32> to vector<1x18xf32>
    %285 = arith.negf %284 : vector<1x18xf32>
    %286 = math.exp %285 : vector<1x18xf32>
    %cst_64 = arith.constant 1.000000e+00 : f32
    %287 = vector.broadcast %cst_64 : f32 to vector<1x18xf32>
    %288 = arith.addf %287, %286 : vector<1x18xf32>
    %289 = arith.divf %287, %288 : vector<1x18xf32>
    %290 = vector.extract_strided_slice %283 {offsets = [0, 18], sizes = [1, 6], strides = [1, 1]} : vector<1x24xf32> to vector<1x6xf32>
    %291 = math.tanh %290 : vector<1x6xf32>
    %292 = vector.extract_strided_slice %289 {offsets = [0, 0], sizes = [1, 6], strides = [1, 1]} : vector<1x18xf32> to vector<1x6xf32>
    %293 = vector.extract_strided_slice %289 {offsets = [0, 6], sizes = [1, 6], strides = [1, 1]} : vector<1x18xf32> to vector<1x6xf32>
    %294 = vector.extract_strided_slice %289 {offsets = [0, 12], sizes = [1, 6], strides = [1, 1]} : vector<1x18xf32> to vector<1x6xf32>
    %295 = arith.mulf %293, %278 : vector<1x6xf32>
    %296 = arith.mulf %292, %291 : vector<1x6xf32>
    %297 = arith.addf %295, %296 : vector<1x6xf32>
    %298 = math.tanh %297 : vector<1x6xf32>
    %299 = arith.mulf %294, %298 : vector<1x6xf32>
    %300 = tpu.concatenate %154, %299 in 1 : vector<1x6xf32>, vector<1x6xf32> -> vector<1x12xf32>
    %cst_65 = arith.constant dense<0.000000e+00> : vector<1x24xf32>
    %301 = tpu.matmul %300, %181, %cst_65 {dimension_numbers = #tpu.dot_dimension_numbers<[1], [0], [0], [1], [0, 0, 1, 1], [], []>} : vector<1x12xf32>, vector<12x24xf32>, vector<1x24xf32> -> vector<1x24xf32>
    %302 = arith.addf %301, %183 : vector<1x24xf32>
    %303 = vector.extract_strided_slice %302 {offsets = [0, 0], sizes = [1, 18], strides = [1, 1]} : vector<1x24xf32> to vector<1x18xf32>
    %304 = arith.negf %303 : vector<1x18xf32>
    %305 = math.exp %304 : vector<1x18xf32>
    %cst_66 = arith.constant 1.000000e+00 : f32
    %306 = vector.broadcast %cst_66 : f32 to vector<1x18xf32>
    %307 = arith.addf %306, %305 : vector<1x18xf32>
    %308 = arith.divf %306, %307 : vector<1x18xf32>
    %309 = vector.extract_strided_slice %302 {offsets = [0, 18], sizes = [1, 6], strides = [1, 1]} : vector<1x24xf32> to vector<1x6xf32>
    %310 = math.tanh %309 : vector<1x6xf32>
    %311 = vector.extract_strided_slice %308 {offsets = [0, 0], sizes = [1, 6], strides = [1, 1]} : vector<1x18xf32> to vector<1x6xf32>
    %312 = vector.extract_strided_slice %308 {offsets = [0, 6], sizes = [1, 6], strides = [1, 1]} : vector<1x18xf32> to vector<1x6xf32>
    %313 = vector.extract_strided_slice %308 {offsets = [0, 12], sizes = [1, 6], strides = [1, 1]} : vector<1x18xf32> to vector<1x6xf32>
    %314 = arith.mulf %312, %297 : vector<1x6xf32>
    %315 = arith.mulf %311, %310 : vector<1x6xf32>
    %316 = arith.addf %314, %315 : vector<1x6xf32>
    %317 = math.tanh %316 : vector<1x6xf32>
    %318 = arith.mulf %313, %317 : vector<1x6xf32>
    %319 = tpu.concatenate %173, %318 in 1 : vector<1x6xf32>, vector<1x6xf32> -> vector<1x12xf32>
    %cst_67 = arith.constant dense<0.000000e+00> : vector<1x24xf32>
    %320 = tpu.matmul %319, %181, %cst_67 {dimension_numbers = #tpu.dot_dimension_numbers<[1], [0], [0], [1], [0, 0, 1, 1], [], []>} : vector<1x12xf32>, vector<12x24xf32>, vector<1x24xf32> -> vector<1x24xf32>
    %321 = arith.addf %320, %183 : vector<1x24xf32>
    %322 = vector.extract_strided_slice %321 {offsets = [0, 0], sizes = [1, 18], strides = [1, 1]} : vector<1x24xf32> to vector<1x18xf32>
    %323 = arith.negf %322 : vector<1x18xf32>
    %324 = math.exp %323 : vector<1x18xf32>
    %cst_68 = arith.constant 1.000000e+00 : f32
    %325 = vector.broadcast %cst_68 : f32 to vector<1x18xf32>
    %326 = arith.addf %325, %324 : vector<1x18xf32>
    %327 = arith.divf %325, %326 : vector<1x18xf32>
    %328 = vector.extract_strided_slice %321 {offsets = [0, 18], sizes = [1, 6], strides = [1, 1]} : vector<1x24xf32> to vector<1x6xf32>
    %329 = math.tanh %328 : vector<1x6xf32>
    %330 = vector.extract_strided_slice %327 {offsets = [0, 0], sizes = [1, 6], strides = [1, 1]} : vector<1x18xf32> to vector<1x6xf32>
    %331 = vector.extract_strided_slice %327 {offsets = [0, 6], sizes = [1, 6], strides = [1, 1]} : vector<1x18xf32> to vector<1x6xf32>
    %332 = vector.extract_strided_slice %327 {offsets = [0, 12], sizes = [1, 6], strides = [1, 1]} : vector<1x18xf32> to vector<1x6xf32>
    %333 = arith.mulf %331, %316 : vector<1x6xf32>
    %334 = arith.mulf %330, %329 : vector<1x6xf32>
    %335 = arith.addf %333, %334 : vector<1x6xf32>
    %336 = math.tanh %335 : vector<1x6xf32>
    %337 = arith.mulf %332, %336 : vector<1x6xf32>
    %c1_69 = arith.constant 1 : index
    %c0_70 = arith.constant 0 : index
    %c0_71 = arith.constant 0 : index
    %338 = vector.load %arg5[%c1_69, %c0_70, %c0_71] : memref<2x1x6xf32, #tpu.memory_space<vmem>>, vector<1x1x6xf32>
    %339 = vector.shape_cast %338 : vector<1x1x6xf32> to vector<1x6xf32>
    %340 = vector.shape_cast %337 : vector<1x6xf32> to vector<1x1x6xf32>
    tpu.vector_store %arg5[%c1_69, %c0_70, %c0_71], %340 {strides = array<i32>} : memref<2x1x6xf32, #tpu.memory_space<vmem>>, vector<1x1x6xf32>,
    %c1_72 = arith.constant 1 : index
    %c0_73 = arith.constant 0 : index
    %c0_74 = arith.constant 0 : index
    %341 = vector.load %arg6[%c1_72, %c0_73, %c0_74] : memref<2x1x6xf32, #tpu.memory_space<vmem>>, vector<1x1x6xf32>
    %342 = vector.shape_cast %341 : vector<1x1x6xf32> to vector<1x6xf32>
    %343 = vector.shape_cast %335 : vector<1x6xf32> to vector<1x1x6xf32>
    tpu.vector_store %arg6[%c1_72, %c0_73, %c0_74], %343 {strides = array<i32>} : memref<2x1x6xf32, #tpu.memory_space<vmem>>, vector<1x1x6xf32>,
    %c0_75 = arith.constant 0 : index
    %c0_76 = arith.constant 0 : index
    %c0_77 = arith.constant 0 : index
    %344 = vector.load %arg4[%c0_75, %c0_76, %c0_77] : memref<8x1x6xf32, #tpu.memory_space<vmem>>, vector<1x1x6xf32>
    %345 = vector.shape_cast %344 : vector<1x1x6xf32> to vector<1x6xf32>
    %346 = vector.shape_cast %204 : vector<1x6xf32> to vector<1x1x6xf32>
    tpu.vector_store %arg4[%c0_75, %c0_76, %c0_77], %346 {strides = array<i32>} : memref<8x1x6xf32, #tpu.memory_space<vmem>>, vector<1x1x6xf32>,
    %c1_78 = arith.constant 1 : index
    %c0_79 = arith.constant 0 : index
    %c0_80 = arith.constant 0 : index
    %347 = vector.load %arg4[%c1_78, %c0_79, %c0_80] : memref<8x1x6xf32, #tpu.memory_space<vmem>>, vector<1x1x6xf32>
    %348 = vector.shape_cast %347 : vector<1x1x6xf32> to vector<1x6xf32>
    %349 = vector.shape_cast %223 : vector<1x6xf32> to vector<1x1x6xf32>
    tpu.vector_store %arg4[%c1_78, %c0_79, %c0_80], %349 {strides = array<i32>} : memref<8x1x6xf32, #tpu.memory_space<vmem>>, vector<1x1x6xf32>,
    %c2_81 = arith.constant 2 : index
    %c0_82 = arith.constant 0 : index
    %c0_83 = arith.constant 0 : index
    %350 = vector.load %arg4[%c2_81, %c0_82, %c0_83] : memref<8x1x6xf32, #tpu.memory_space<vmem>>, vector<1x1x6xf32>
    %351 = vector.shape_cast %350 : vector<1x1x6xf32> to vector<1x6xf32>
    %352 = vector.shape_cast %242 : vector<1x6xf32> to vector<1x1x6xf32>
    tpu.vector_store %arg4[%c2_81, %c0_82, %c0_83], %352 {strides = array<i32>} : memref<8x1x6xf32, #tpu.memory_space<vmem>>, vector<1x1x6xf32>,
    %c3_84 = arith.constant 3 : index
    %c0_85 = arith.constant 0 : index
    %c0_86 = arith.constant 0 : index
    %353 = vector.load %arg4[%c3_84, %c0_85, %c0_86] : memref<8x1x6xf32, #tpu.memory_space<vmem>>, vector<1x1x6xf32>
    %354 = vector.shape_cast %353 : vector<1x1x6xf32> to vector<1x6xf32>
    %355 = vector.shape_cast %261 : vector<1x6xf32> to vector<1x1x6xf32>
    tpu.vector_store %arg4[%c3_84, %c0_85, %c0_86], %355 {strides = array<i32>} : memref<8x1x6xf32, #tpu.memory_space<vmem>>, vector<1x1x6xf32>,
    %c4_87 = arith.constant 4 : index
    %c0_88 = arith.constant 0 : index
    %c0_89 = arith.constant 0 : index
    %356 = vector.load %arg4[%c4_87, %c0_88, %c0_89] : memref<8x1x6xf32, #tpu.memory_space<vmem>>, vector<1x1x6xf32>
    %357 = vector.shape_cast %356 : vector<1x1x6xf32> to vector<1x6xf32>
    %358 = vector.shape_cast %280 : vector<1x6xf32> to vector<1x1x6xf32>
    tpu.vector_store %arg4[%c4_87, %c0_88, %c0_89], %358 {strides = array<i32>} : memref<8x1x6xf32, #tpu.memory_space<vmem>>, vector<1x1x6xf32>,
    %c5_90 = arith.constant 5 : index
    %c0_91 = arith.constant 0 : index
    %c0_92 = arith.constant 0 : index
    %359 = vector.load %arg4[%c5_90, %c0_91, %c0_92] : memref<8x1x6xf32, #tpu.memory_space<vmem>>, vector<1x1x6xf32>
    %360 = vector.shape_cast %359 : vector<1x1x6xf32> to vector<1x6xf32>
    %361 = vector.shape_cast %299 : vector<1x6xf32> to vector<1x1x6xf32>
    tpu.vector_store %arg4[%c5_90, %c0_91, %c0_92], %361 {strides = array<i32>} : memref<8x1x6xf32, #tpu.memory_space<vmem>>, vector<1x1x6xf32>,
    %c6_93 = arith.constant 6 : index
    %c0_94 = arith.constant 0 : index
    %c0_95 = arith.constant 0 : index
    %362 = vector.load %arg4[%c6_93, %c0_94, %c0_95] : memref<8x1x6xf32, #tpu.memory_space<vmem>>, vector<1x1x6xf32>
    %363 = vector.shape_cast %362 : vector<1x1x6xf32> to vector<1x6xf32>
    %364 = vector.shape_cast %318 : vector<1x6xf32> to vector<1x1x6xf32>
    tpu.vector_store %arg4[%c6_93, %c0_94, %c0_95], %364 {strides = array<i32>} : memref<8x1x6xf32, #tpu.memory_space<vmem>>, vector<1x1x6xf32>,
    %c7_96 = arith.constant 7 : index
    %c0_97 = arith.constant 0 : index
    %c0_98 = arith.constant 0 : index
    %365 = vector.load %arg4[%c7_96, %c0_97, %c0_98] : memref<8x1x6xf32, #tpu.memory_space<vmem>>, vector<1x1x6xf32>
    %366 = vector.shape_cast %365 : vector<1x1x6xf32> to vector<1x6xf32>
    %367 = vector.shape_cast %337 : vector<1x6xf32> to vector<1x1x6xf32>
    tpu.vector_store %arg4[%c7_96, %c0_97, %c0_98], %367 {strides = array<i32>} : memref<8x1x6xf32, #tpu.memory_space<vmem>>, vector<1x1x6xf32>,
    return
  }
  func.func @transform_0(%arg0: i32) -> (i32, i32, i32) {
    %c0_i32 = arith.constant 0 : i32
    %c0_i32_0 = arith.constant 0 : i32
    %c0_i32_1 = arith.constant 0 : i32
    %c0_i32_2 = arith.constant 0 : i32
    return %c0_i32, %c0_i32_0, %c0_i32_1 : i32, i32, i32
  }
  func.func @transform_1(%arg0: i32) -> (i32, i32, i32) {
    %c0_i32 = arith.constant 0 : i32
    %c0_i32_0 = arith.constant 0 : i32
    %c0_i32_1 = arith.constant 0 : i32
    %c0_i32_2 = arith.constant 0 : i32
    return %c0_i32, %c0_i32_0, %c0_i32_1 : i32, i32, i32
  }
  func.func @transform_2(%arg0: i32) -> (i32, i32, i32) {
    %c0_i32 = arith.constant 0 : i32
    %c0_i32_0 = arith.constant 0 : i32
    %c0_i32_1 = arith.constant 0 : i32
    %c0_i32_2 = arith.constant 0 : i32
    return %c0_i32, %c0_i32_0, %c0_i32_1 : i32, i32, i32
  }
  func.func @transform_3(%arg0: i32) -> (i32, i32, i32) {
    %c0_i32 = arith.constant 0 : i32
    %c0_i32_0 = arith.constant 0 : i32
    %c0_i32_1 = arith.constant 0 : i32
    %c0_i32_2 = arith.constant 0 : i32
    return %c0_i32, %c0_i32_0, %c0_i32_1 : i32, i32, i32
  }
  func.func @transform_4(%arg0: i32) -> (i32, i32, i32) {
    %c0_i32 = arith.constant 0 : i32
    %c0_i32_0 = arith.constant 0 : i32
    %c0_i32_1 = arith.constant 0 : i32
    %c0_i32_2 = arith.constant 0 : i32
    return %c0_i32, %c0_i32_0, %c0_i32_1 : i32, i32, i32
  }
  func.func @transform_5(%arg0: i32) -> (i32, i32, i32) {
    %c0_i32 = arith.constant 0 : i32
    %c0_i32_0 = arith.constant 0 : i32
    %c0_i32_1 = arith.constant 0 : i32
    %c0_i32_2 = arith.constant 0 : i32
    return %c0_i32, %c0_i32_0, %c0_i32_1 : i32, i32, i32
  }
}

</mosaic_0001>

<llo_original>
// kernel: tpu_custom_call.1
$region0: #{tpu_custom_call.1}
  #allocation0 [shape = 'u32[]', space=smem, size = 0x4, offset = 0x4, fixed_abs, tag = 'smem constant byte address 0x4 - core index']
  #allocation1 [shape = 'u32[144,128]{1,0:T(1,128)}', space=vmem, size = 0x12000, scoped, tag = 'internal scratch']
  %s0 = inlined_call_operand.vmem [shape: f32[8,1,6], index: 0, kind: input, shape index: {}]
  %s1 = inlined_call_operand.vmem [shape: f32[2,12,24], index: 1, kind: input, shape index: {}]
  %s2 = inlined_call_operand.vmem [shape: f32[2,1,24], index: 2, kind: input, shape index: {}]
  %s3 = inlined_call_operand.vmem [shape: f32[8,1,6], index: 3, kind: output, shape index: {0}]
  %s4 = inlined_call_operand.hbm [shape: f32[2,1,6], index: 4, kind: output, shape index: {1}]
  %s5 = inlined_call_operand.hbm [shape: f32[2,1,6], index: 5, kind: output, shape index: {2}]
  %6 = xla_tuple %s3, %s4, %s5
  %s7 = sld [smem:[#allocation0]]
  $region38: #{tpu_custom_call.1} parent=0
    _
  %s9 = ssub.s32 1, %s7
  %s10 = scalar_select 0, %s9, %s7
  $region1: #{tpu_custom_call.1} parent=0
    #allocation2 [shape = 'u8[1024]{0}', space=vmem, size = 0x400, scoped, tag = 'output window, operand 1, single buffered']
    #allocation3 [shape = 's32[1]{0}', space=sflag, size = 0x4, scoped, tag = 'scoped memory for tpu_custom_call.1']
    #allocation4 [shape = 'u8[1024]{0}', space=vmem, size = 0x400, scoped, tag = 'output window, operand 2, single buffered']
    #allocation5 [shape = 's32[1]{0}', space=sflag, size = 0x4, scoped, tag = 'scoped memory for tpu_custom_call.1']
    %11 = vsyncpa [#allocation3], 0
    %12 = vsyncpa [#allocation5], 0
    // Predicated region
    $region2: #{tpu_custom_call.1} parent=1 // pred_check
      _
    $region3: #{tpu_custom_call.1} parent=1 // pred_check_branch
      %14 = sbr.rel (0) target = $region5
    $region4: #{tpu_custom_call.1} parent=1 // pred_region
      _
    $region5: #{tpu_custom_call.1} parent=1 // pred_fallthru
      _
    // Predicated region
    $region6: #{tpu_custom_call.1} parent=1 // pred_check
      _
    $region7: #{tpu_custom_call.1} parent=1 // pred_check_branch
      %16 = sbr.rel (0) target = $region9
    $region8: #{tpu_custom_call.1} parent=1 // pred_region
      _
    $region9: #{tpu_custom_call.1} parent=1 // pred_fallthru
      _
    // Predicated region
    $region10: #{tpu_custom_call.1} parent=1 // pred_check
      _
    $region11: #{tpu_custom_call.1} parent=1 // pred_check_branch
      %18 = sbr.rel (0) target = $region13
    $region12: #{tpu_custom_call.1} parent=1 // pred_region
      _
    $region13: #{tpu_custom_call.1} parent=1 // pred_fallthru
      _
    %v19 = vld [vmem:[%s0] sm:$0x1]
    %s20 = scalar_lea.vmem %s0, 1
    %v21 = vld [vmem:[%s20] sm:$0x1]
    %s22 = scalar_lea.vmem %s0, 2
    %v23 = vld [vmem:[%s22] sm:$0x1]
    %s24 = scalar_lea.vmem %s0, 3
    %v25 = vld [vmem:[%s24] sm:$0x1]
    %s26 = scalar_lea.vmem %s0, 4
    %v27 = vld [vmem:[%s26] sm:$0x1]
    %s28 = scalar_lea.vmem %s0, 5
    %v29 = vld [vmem:[%s28] sm:$0x1]
    %s30 = scalar_lea.vmem %s0, 6
    %v31 = vld [vmem:[%s30] sm:$0x1]
    %s32 = scalar_lea.vmem %s0, 7
    %v33 = vld [vmem:[%s32] sm:$0x1]
    %v34 = vld [vmem:[%s1] sm:$0xff]
    %v35 = vld [vmem:[%s1 + $0x8] sm:$0xf]
    %v36 = vld [vmem:[%s2] sm:$0x1]
    %vm37 = vcmask 48128
    %v38 = vsel %vm37, %v19, 0.0
    %vm39 = vcmask 97280
    %v41 = vsel %vm39, %v38, 0
    %vm43 = vcmask 1043456
    %v45 = vsel %vm43, %v35, 0
    %47 = vmatprep.subr.mxu0 0.0
    %48 = vmatpush1.msra.mxu0 %v34
    %49 = vmatprep.subr.mxu0 0.0
    %50 = vmatpush1.msra.mxu0 %v45
    %51 = vmatprep.subr.mxu0 0.0
    %52 = vmatpush1.msra.mxu0 0.0
    %53 = vmatprep.subr.mxu0 0.0
    %54 = vmatpush1.msra.mxu0 0.0
    %55 = vmatprep.subr.mxu0 0.0
    %56 = vmatpush1.msra.mxu0 0.0
    %57 = vmatprep.subr.mxu0 0.0
    %58 = vmatpush1.msra.mxu0 0.0
    %59 = vmatprep.subr.mxu0 0.0
    %60 = vmatpush1.msra.mxu0 0.0
    %61 = vmatprep.subr.mxu0 0.0
    %62 = vmatpush1.msra.mxu0 0.0
    %63 = vmatprep.subr.mxu0 0.0
    %64 = vmatpush1.msra.mxu0 0.0
    %65 = vmatprep.subr.mxu0 0.0
    %66 = vmatpush1.msra.mxu0 0.0
    %67 = vmatprep.subr.mxu0 0.0
    %68 = vmatpush1.msra.mxu0 0.0
    %69 = vmatprep.subr.mxu0 0.0
    %70 = vmatpush1.msra.mxu0 0.0
    %71 = vmatprep.subr.mxu0 0.0
    %72 = vmatpush1.msra.mxu0 0.0
    %73 = vmatprep.subr.mxu0 0.0
    %74 = vmatpush1.msra.mxu0 0.0
    %75 = vmatprep.subr.mxu0 0.0
    %76 = vmatpush1.msra.mxu0 0.0
    %77 = vmatprep.subr.mxu0 0.0
    %78 = vmatpush1.msra.mxu0 0.0
    %79 = vmatprep.subr.mxu0 0.0
    %80 = vmatpush1.msra.mxu0 0.0
    %81 = vmatprep.subr.mxu0 0.0
    %82 = vmatpush1.msra.mxu0 0.0
    %83 = vmatprep.subr.mxu0 0.0
    %84 = vmatpush1.msra.mxu0 0.0
    %85 = vmatprep.subr.mxu0 0.0
    %86 = vmatpush1.msra.mxu0 0.0
    %87 = vmatprep.subr.mxu0 0.0
    %88 = vmatpush1.msra.mxu0 0.0
    %89 = vmatprep.subr.mxu0 0.0
    %90 = vmatpush1.msra.mxu0 0.0
    %91 = vmatprep.subr.mxu0 0.0
    %92 = vmatpush1.msra.mxu0 0.0
    %93 = vmatprep.subr.mxu0 0.0
    %94 = vmatpush1.msra.mxu0 0.0
    %95 = vmatprep.subr.mxu0 0.0
    %96 = vmatpush1.msra.mxu0 0.0
    %97 = vmatprep.subr.mxu0 0.0
    %98 = vmatpush1.msra.mxu0 0.0
    %99 = vmatprep.subr.mxu0 0.0
    %100 = vmatpush1.msra.mxu0 0.0
    %101 = vmatprep.subr.mxu0 0.0
    %102 = vmatpush1.msra.mxu0 0.0
    %103 = vmatprep.subr.mxu0 0.0
    %104 = vmatpush1.msra.mxu0 0.0
    %105 = vmatprep.subr.mxu0 0.0
    %106 = vmatpush1.msra.mxu0 0.0
    %107 = vmatprep.subr.mxu0 0.0
    %108 = vmatpush1.msra.mxu0 0.0
    %109 = vmatprep.subr.mxu0 0.0
    %110 = vmatpush1.msra.mxu0 0.0
    %111 = vmatprep.mubr.f32.mxu0 0.0
    %112 = vmatmul.mubr.f32.gmra.mrb[0].mxu0 %v41
    %v113 = vpop.f32.mrb[0].mxu0
    %v114 = vadd.f32 %v36, %v113
    %v115 = vpop.f32.mrb[0].mxu0
    %116 = vdwg.mxu0
    %v117 = vxor.u32 %v114, 2147483648
    %v118 = vmul.f32 %v117, 1.442695
    %v119 = vpow.pop %v118
    %v120 = vadd.f32 %v119, 1.0
    %v121 = vrcp.pop %v120
    %v122 = vmul.f32 1.0, %v121
    %v123 = vtanh.pop %v114
    %v124 = vmul.f32 %v122, 0.0
    %126 = vrot.lane.b32.xlu0 %v123, 110
    %v127 = vpop.permute.xlu0 %126
    %v129 = vmul.f32 %v122, %v127
    %131 = vrot.lane.b32.xlu0 %v129, 6
    %v132 = vpop.permute.xlu0 %131
    %v134 = vadd.f32 %v124, %v132
    %v135 = vtanh.pop %v134
    %137 = vrot.lane.b32.xlu0 %v135, 6
    %v138 = vpop.permute.xlu0 %137
    %v140 = vmul.f32 %v122, %v138
    %142 = vrot.lane.b32.xlu0 %v140, 122
    %v143 = vpop.permute.xlu0 %142
    %v145 = vsel %vm37, %v21, %v143
    %v147 = vsel %vm39, %v145, 0
    %149 = vmatprep.subr.mxu0 0.0
    %150 = vmatpush1.msra.mxu0 %v34
    %151 = vmatprep.subr.mxu0 0.0
    %152 = vmatpush1.msra.mxu0 %v45
    %153 = vmatprep.subr.mxu0 0.0
    %154 = vmatpush1.msra.mxu0 0.0
    %155 = vmatprep.subr.mxu0 0.0
    %156 = vmatpush1.msra.mxu0 0.0
    %157 = vmatprep.subr.mxu0 0.0
    %158 = vmatpush1.msra.mxu0 0.0
    %159 = vmatprep.subr.mxu0 0.0
    %160 = vmatpush1.msra.mxu0 0.0
    %161 = vmatprep.subr.mxu0 0.0
    %162 = vmatpush1.msra.mxu0 0.0
    %163 = vmatprep.subr.mxu0 0.0
    %164 = vmatpush1.msra.mxu0 0.0
    %165 = vmatprep.subr.mxu0 0.0
    %166 = vmatpush1.msra.mxu0 0.0
    %167 = vmatprep.subr.mxu0 0.0
    %168 = vmatpush1.msra.mxu0 0.0
    %169 = vmatprep.subr.mxu0 0.0
    %170 = vmatpush1.msra.mxu0 0.0
    %171 = vmatprep.subr.mxu0 0.0
    %172 = vmatpush1.msra.mxu0 0.0
    %173 = vmatprep.subr.mxu0 0.0
    %174 = vmatpush1.msra.mxu0 0.0
    %175 = vmatprep.subr.mxu0 0.0
    %176 = vmatpush1.msra.mxu0 0.0
    %177 = vmatprep.subr.mxu0 0.0
    %178 = vmatpush1.msra.mxu0 0.0
    %179 = vmatprep.subr.mxu0 0.0
    %180 = vmatpush1.msra.mxu0 0.0
    %181 = vmatprep.subr.mxu0 0.0
    %182 = vmatpush1.msra.mxu0 0.0
    %183 = vmatprep.subr.mxu0 0.0
    %184 = vmatpush1.msra.mxu0 0.0
    %185 = vmatprep.subr.mxu0 0.0
    %186 = vmatpush1.msra.mxu0 0.0
    %187 = vmatprep.subr.mxu0 0.0
    %188 = vmatpush1.msra.mxu0 0.0
    %189 = vmatprep.subr.mxu0 0.0
    %190 = vmatpush1.msra.mxu0 0.0
    %191 = vmatprep.subr.mxu0 0.0
    %192 = vmatpush1.msra.mxu0 0.0
    %193 = vmatprep.subr.mxu0 0.0
    %194 = vmatpush1.msra.mxu0 0.0
    %195 = vmatprep.subr.mxu0 0.0
    %196 = vmatpush1.msra.mxu0 0.0
    %197 = vmatprep.subr.mxu0 0.0
    %198 = vmatpush1.msra.mxu0 0.0
    %199 = vmatprep.subr.mxu0 0.0
    %200 = vmatpush1.msra.mxu0 0.0
    %201 = vmatprep.subr.mxu0 0.0
    %202 = vmatpush1.msra.mxu0 0.0
    %203 = vmatprep.subr.mxu0 0.0
    %204 = vmatpush1.msra.mxu0 0.0
    %205 = vmatprep.subr.mxu0 0.0
    %206 = vmatpush1.msra.mxu0 0.0
    %207 = vmatprep.subr.mxu0 0.0
    %208 = vmatpush1.msra.mxu0 0.0
    %209 = vmatprep.subr.mxu0 0.0
    %210 = vmatpush1.msra.mxu0 0.0
    %211 = vmatprep.subr.mxu0 0.0
    %212 = vmatpush1.msra.mxu0 0.0
    %213 = vmatprep.mubr.f32.mxu0 0.0
    %214 = vmatmul.mubr.f32.gmra.mrb[0].mxu0 %v147
    %v215 = vpop.f32.mrb[0].mxu0
    %v216 = vadd.f32 %v36, %v215
    %v217 = vpop.f32.mrb[0].mxu0
    %218 = vdwg.mxu0
    %v219 = vxor.u32 %v216, 2147483648
    %v220 = vmul.f32 %v219, 1.442695
    %v221 = vpow.pop %v220
    %v222 = vadd.f32 %v221, 1.0
    %v223 = vrcp.pop %v222
    %v224 = vmul.f32 1.0, %v223
    %v225 = vtanh.pop %v216
    %v226 = vmul.f32 %v224, %v134
    %228 = vrot.lane.b32.xlu0 %v225, 110
    %v229 = vpop.permute.xlu0 %228
    %v231 = vmul.f32 %v224, %v229
    %233 = vrot.lane.b32.xlu0 %v231, 6
    %v234 = vpop.permute.xlu0 %233
    %v236 = vadd.f32 %v226, %v234
    %v237 = vtanh.pop %v236
    %239 = vrot.lane.b32.xlu0 %v237, 6
    %v240 = vpop.permute.xlu0 %239
    %v242 = vmul.f32 %v224, %v240
    %244 = vrot.lane.b32.xlu0 %v242, 122
    %v245 = vpop.permute.xlu0 %244
    %v247 = vsel %vm37, %v23, %v245
    %v249 = vsel %vm39, %v247, 0
    %251 = vmatprep.subr.mxu0 0.0
    %252 = vmatpush1.msra.mxu0 %v34
    %253 = vmatprep.subr.mxu0 0.0
    %254 = vmatpush1.msra.mxu0 %v45
    %255 = vmatprep.subr.mxu0 0.0
    %256 = vmatpush1.msra.mxu0 0.0
    %257 = vmatprep.subr.mxu0 0.0
    %258 = vmatpush1.msra.mxu0 0.0
    %259 = vmatprep.subr.mxu0 0.0
    %260 = vmatpush1.msra.mxu0 0.0
    %261 = vmatprep.subr.mxu0 0.0
    %262 = vmatpush1.msra.mxu0 0.0
    %263 = vmatprep.subr.mxu0 0.0
    %264 = vmatpush1.msra.mxu0 0.0
    %265 = vmatprep.subr.mxu0 0.0
    %266 = vmatpush1.msra.mxu0 0.0
    %267 = vmatprep.subr.mxu0 0.0
    %268 = vmatpush1.msra.mxu0 0.0
    %269 = vmatprep.subr.mxu0 0.0
    %270 = vmatpush1.msra.mxu0 0.0
    %271 = vmatprep.subr.mxu0 0.0
    %272 = vmatpush1.msra.mxu0 0.0
    %273 = vmatprep.subr.mxu0 0.0
    %274 = vmatpush1.msra.mxu0 0.0
    %275 = vmatprep.subr.mxu0 0.0
    %276 = vmatpush1.msra.mxu0 0.0
    %277 = vmatprep.subr.mxu0 0.0
    %278 = vmatpush1.msra.mxu0 0.0
    %279 = vmatprep.subr.mxu0 0.0
    %280 = vmatpush1.msra.mxu0 0.0
    %281 = vmatprep.subr.mxu0 0.0
    %282 = vmatpush1.msra.mxu0 0.0
    %283 = vmatprep.subr.mxu0 0.0
    %284 = vmatpush1.msra.mxu0 0.0
    %285 = vmatprep.subr.mxu0 0.0
    %286 = vmatpush1.msra.mxu0 0.0
    %287 = vmatprep.subr.mxu0 0.0
    %288 = vmatpush1.msra.mxu0 0.0
    %289 = vmatprep.subr.mxu0 0.0
    %290 = vmatpush1.msra.mxu0 0.0
    %291 = vmatprep.subr.mxu0 0.0
    %292 = vmatpush1.msra.mxu0 0.0
    %293 = vmatprep.subr.mxu0 0.0
    %294 = vmatpush1.msra.mxu0 0.0
    %295 = vmatprep.subr.mxu0 0.0
    %296 = vmatpush1.msra.mxu0 0.0
    %297 = vmatprep.subr.mxu0 0.0
    %298 = vmatpush1.msra.mxu0 0.0
    %299 = vmatprep.subr.mxu0 0.0
    %300 = vmatpush1.msra.mxu0 0.0
    %301 = vmatprep.subr.mxu0 0.0
    %302 = vmatpush1.msra.mxu0 0.0
    %303 = vmatprep.subr.mxu0 0.0
    %304 = vmatpush1.msra.mxu0 0.0
    %305 = vmatprep.subr.mxu0 0.0
    %306 = vmatpush1.msra.mxu0 0.0
    %307 = vmatprep.subr.mxu0 0.0
    %308 = vmatpush1.msra.mxu0 0.0
    %309 = vmatprep.subr.mxu0 0.0
    %310 = vmatpush1.msra.mxu0 0.0
    %311 = vmatprep.subr.mxu0 0.0
    %312 = vmatpush1.msra.mxu0 0.0
    %313 = vmatprep.subr.mxu0 0.0
    %314 = vmatpush1.msra.mxu0 0.0
    %315 = vmatprep.mubr.f32.mxu0 0.0
    %316 = vmatmul.mubr.f32.gmra.mrb[0].mxu0 %v249
    %v317 = vpop.f32.mrb[0].mxu0
    %v318 = vadd.f32 %v36, %v317
    %v319 = vpop.f32.mrb[0].mxu0
    %320 = vdwg.mxu0
    %v321 = vxor.u32 %v318, 2147483648
    %v322 = vmul.f32 %v321, 1.442695
    %v323 = vpow.pop %v322
    %v324 = vadd.f32 %v323, 1.0
    %v325 = vrcp.pop %v324
    %v326 = vmul.f32 1.0, %v325
    %v327 = vtanh.pop %v318
    %v328 = vmul.f32 %v326, %v236
    %330 = vrot.lane.b32.xlu0 %v327, 110
    %v331 = vpop.permute.xlu0 %330
    %v333 = vmul.f32 %v326, %v331
    %335 = vrot.lane.b32.xlu0 %v333, 6
    %v336 = vpop.permute.xlu0 %335
    %v338 = vadd.f32 %v328, %v336
    %v339 = vtanh.pop %v338
    %341 = vrot.lane.b32.xlu0 %v339, 6
    %v342 = vpop.permute.xlu0 %341
    %v344 = vmul.f32 %v326, %v342
    %346 = vrot.lane.b32.xlu0 %v344, 122
    %v347 = vpop.permute.xlu0 %346
    %v349 = vsel %vm37, %v25, %v347
    %v351 = vsel %vm39, %v349, 0
    %353 = vmatprep.subr.mxu0 0.0
    %354 = vmatpush1.msra.mxu0 %v34
    %355 = vmatprep.subr.mxu0 0.0
    %356 = vmatpush1.msra.mxu0 %v45
    %357 = vmatprep.subr.mxu0 0.0
    %358 = vmatpush1.msra.mxu0 0.0
    %359 = vmatprep.subr.mxu0 0.0
    %360 = vmatpush1.msra.mxu0 0.0
    %361 = vmatprep.subr.mxu0 0.0
    %362 = vmatpush1.msra.mxu0 0.0
    %363 = vmatprep.subr.mxu0 0.0
    %364 = vmatpush1.msra.mxu0 0.0
    %365 = vmatprep.subr.mxu0 0.0
    %366 = vmatpush1.msra.mxu0 0.0
    %367 = vmatprep.subr.mxu0 0.0
    %368 = vmatpush1.msra.mxu0 0.0
    %369 = vmatprep.subr.mxu0 0.0
    %370 = vmatpush1.msra.mxu0 0.0
    %371 = vmatprep.subr.mxu0 0.0
    %372 = vmatpush1.msra.mxu0 0.0
    %373 = vmatprep.subr.mxu0 0.0
    %374 = vmatpush1.msra.mxu0 0.0
    %375 = vmatprep.subr.mxu0 0.0
    %376 = vmatpush1.msra.mxu0 0.0
    %377 = vmatprep.subr.mxu0 0.0
    %378 = vmatpush1.msra.mxu0 0.0
    %379 = vmatprep.subr.mxu0 0.0
    %380 = vmatpush1.msra.mxu0 0.0
    %381 = vmatprep.subr.mxu0 0.0
    %382 = vmatpush1.msra.mxu0 0.0
    %383 = vmatprep.subr.mxu0 0.0
    %384 = vmatpush1.msra.mxu0 0.0
    %385 = vmatprep.subr.mxu0 0.0
    %386 = vmatpush1.msra.mxu0 0.0
    %387 = vmatprep.subr.mxu0 0.0
    %388 = vmatpush1.msra.mxu0 0.0
    %389 = vmatprep.subr.mxu0 0.0
    %390 = vmatpush1.msra.mxu0 0.0
    %391 = vmatprep.subr.mxu0 0.0
    %392 = vmatpush1.msra.mxu0 0.0
    %393 = vmatprep.subr.mxu0 0.0
    %394 = vmatpush1.msra.mxu0 0.0
    %395 = vmatprep.subr.mxu0 0.0
    %396 = vmatpush1.msra.mxu0 0.0
    %397 = vmatprep.subr.mxu0 0.0
    %398 = vmatpush1.msra.mxu0 0.0
    %399 = vmatprep.subr.mxu0 0.0
    %400 = vmatpush1.msra.mxu0 0.0
    %401 = vmatprep.subr.mxu0 0.0
    %402 = vmatpush1.msra.mxu0 0.0
    %403 = vmatprep.subr.mxu0 0.0
    %404 = vmatpush1.msra.mxu0 0.0
    %405 = vmatprep.subr.mxu0 0.0
    %406 = vmatpush1.msra.mxu0 0.0
    %407 = vmatprep.subr.mxu0 0.0
    %408 = vmatpush1.msra.mxu0 0.0
    %409 = vmatprep.subr.mxu0 0.0
    %410 = vmatpush1.msra.mxu0 0.0
    %411 = vmatprep.subr.mxu0 0.0
    %412 = vmatpush1.msra.mxu0 0.0
    %413 = vmatprep.subr.mxu0 0.0
    %414 = vmatpush1.msra.mxu0 0.0
    %415 = vmatprep.subr.mxu0 0.0
    %416 = vmatpush1.msra.mxu0 0.0
    %417 = vmatprep.mubr.f32.mxu0 0.0
    %418 = vmatmul.mubr.f32.gmra.mrb[0].mxu0 %v351
    %v419 = vpop.f32.mrb[0].mxu0
    %v420 = vadd.f32 %v36, %v419
    %v421 = vpop.f32.mrb[0].mxu0
    %422 = vdwg.mxu0
    %v423 = vxor.u32 %v420, 2147483648
    %v424 = vmul.f32 %v423, 1.442695
    %v425 = vpow.pop %v424
    %v426 = vadd.f32 %v425, 1.0
    %v427 = vrcp.pop %v426
    %v428 = vmul.f32 1.0, %v427
    %v429 = vtanh.pop %v420
    %v430 = vmul.f32 %v428, %v338
    %432 = vrot.lane.b32.xlu0 %v429, 110
    %v433 = vpop.permute.xlu0 %432
    %v435 = vmul.f32 %v428, %v433
    %437 = vrot.lane.b32.xlu0 %v435, 6
    %v438 = vpop.permute.xlu0 %437
    %v440 = vadd.f32 %v430, %v438
    %v441 = vtanh.pop %v440
    %443 = vrot.lane.b32.xlu0 %v441, 6
    %v444 = vpop.permute.xlu0 %443
    %v446 = vmul.f32 %v428, %v444
    %448 = vrot.lane.b32.xlu0 %v446, 122
    %v449 = vpop.permute.xlu0 %448
    %v451 = vsel %vm37, %v27, %v449
    %v453 = vsel %vm39, %v451, 0
    %455 = vmatprep.subr.mxu0 0.0
    %456 = vmatpush1.msra.mxu0 %v34
    %457 = vmatprep.subr.mxu0 0.0
    %458 = vmatpush1.msra.mxu0 %v45
    %459 = vmatprep.subr.mxu0 0.0
    %460 = vmatpush1.msra.mxu0 0.0
    %461 = vmatprep.subr.mxu0 0.0
    %462 = vmatpush1.msra.mxu0 0.0
    %463 = vmatprep.subr.mxu0 0.0
    %464 = vmatpush1.msra.mxu0 0.0
    %465 = vmatprep.subr.mxu0 0.0
    %466 = vmatpush1.msra.mxu0 0.0
    %467 = vmatprep.subr.mxu0 0.0
    %468 = vmatpush1.msra.mxu0 0.0
    %469 = vmatprep.subr.mxu0 0.0
    %470 = vmatpush1.msra.mxu0 0.0
    %471 = vmatprep.subr.mxu0 0.0
    %472 = vmatpush1.msra.mxu0 0.0
    %473 = vmatprep.subr.mxu0 0.0
    %474 = vmatpush1.msra.mxu0 0.0
    %475 = vmatprep.subr.mxu0 0.0
    %476 = vmatpush1.msra.mxu0 0.0
    %477 = vmatprep.subr.mxu0 0.0
    %478 = vmatpush1.msra.mxu0 0.0
    %479 = vmatprep.subr.mxu0 0.0
    %480 = vmatpush1.msra.mxu0 0.0
    %481 = vmatprep.subr.mxu0 0.0
    %482 = vmatpush1.msra.mxu0 0.0
    %483 = vmatprep.subr.mxu0 0.0
    %484 = vmatpush1.msra.mxu0 0.0
    %485 = vmatprep.subr.mxu0 0.0
    %486 = vmatpush1.msra.mxu0 0.0
    %487 = vmatprep.subr.mxu0 0.0
    %488 = vmatpush1.msra.mxu0 0.0
    %489 = vmatprep.subr.mxu0 0.0
    %490 = vmatpush1.msra.mxu0 0.0
    %491 = vmatprep.subr.mxu0 0.0
    %492 = vmatpush1.msra.mxu0 0.0
    %493 = vmatprep.subr.mxu0 0.0
    %494 = vmatpush1.msra.mxu0 0.0
    %495 = vmatprep.subr.mxu0 0.0
    %496 = vmatpush1.msra.mxu0 0.0
    %497 = vmatprep.subr.mxu0 0.0
    %498 = vmatpush1.msra.mxu0 0.0
    %499 = vmatprep.subr.mxu0 0.0
    %500 = vmatpush1.msra.mxu0 0.0
    %501 = vmatprep.subr.mxu0 0.0
    %502 = vmatpush1.msra.mxu0 0.0
    %503 = vmatprep.subr.mxu0 0.0
    %504 = vmatpush1.msra.mxu0 0.0
    %505 = vmatprep.subr.mxu0 0.0
    %506 = vmatpush1.msra.mxu0 0.0
    %507 = vmatprep.subr.mxu0 0.0
    %508 = vmatpush1.msra.mxu0 0.0
    %509 = vmatprep.subr.mxu0 0.0
    %510 = vmatpush1.msra.mxu0 0.0
    %511 = vmatprep.subr.mxu0 0.0
    %512 = vmatpush1.msra.mxu0 0.0
    %513 = vmatprep.subr.mxu0 0.0
    %514 = vmatpush1.msra.mxu0 0.0
    %515 = vmatprep.subr.mxu0 0.0
    %516 = vmatpush1.msra.mxu0 0.0
    %517 = vmatprep.subr.mxu0 0.0
    %518 = vmatpush1.msra.mxu0 0.0
    %519 = vmatprep.mubr.f32.mxu0 0.0
    %520 = vmatmul.mubr.f32.gmra.mrb[0].mxu0 %v453
    %v521 = vpop.f32.mrb[0].mxu0
    %v522 = vadd.f32 %v36, %v521
    %v523 = vpop.f32.mrb[0].mxu0
    %524 = vdwg.mxu0
    %v525 = vxor.u32 %v522, 2147483648
    %v526 = vmul.f32 %v525, 1.442695
    %v527 = vpow.pop %v526
    %v528 = vadd.f32 %v527, 1.0
    %v529 = vrcp.pop %v528
    %v530 = vmul.f32 1.0, %v529
    %v531 = vtanh.pop %v522
    %v532 = vmul.f32 %v530, %v440
    %534 = vrot.lane.b32.xlu0 %v531, 110
    %v535 = vpop.permute.xlu0 %534
    %v537 = vmul.f32 %v530, %v535
    %539 = vrot.lane.b32.xlu0 %v537, 6
    %v540 = vpop.permute.xlu0 %539
    %v542 = vadd.f32 %v532, %v540
    %v543 = vtanh.pop %v542
    %545 = vrot.lane.b32.xlu0 %v543, 6
    %v546 = vpop.permute.xlu0 %545
    %v548 = vmul.f32 %v530, %v546
    %550 = vrot.lane.b32.xlu0 %v548, 122
    %v551 = vpop.permute.xlu0 %550
    %v553 = vsel %vm37, %v29, %v551
    %v555 = vsel %vm39, %v553, 0
    %557 = vmatprep.subr.mxu0 0.0
    %558 = vmatpush1.msra.mxu0 %v34
    %559 = vmatprep.subr.mxu0 0.0
    %560 = vmatpush1.msra.mxu0 %v45
    %561 = vmatprep.subr.mxu0 0.0
    %562 = vmatpush1.msra.mxu0 0.0
    %563 = vmatprep.subr.mxu0 0.0
    %564 = vmatpush1.msra.mxu0 0.0
    %565 = vmatprep.subr.mxu0 0.0
    %566 = vmatpush1.msra.mxu0 0.0
    %567 = vmatprep.subr.mxu0 0.0
    %568 = vmatpush1.msra.mxu0 0.0
    %569 = vmatprep.subr.mxu0 0.0
    %570 = vmatpush1.msra.mxu0 0.0
    %571 = vmatprep.subr.mxu0 0.0
    %572 = vmatpush1.msra.mxu0 0.0
    %573 = vmatprep.subr.mxu0 0.0
    %574 = vmatpush1.msra.mxu0 0.0
    %575 = vmatprep.subr.mxu0 0.0
    %576 = vmatpush1.msra.mxu0 0.0
    %577 = vmatprep.subr.mxu0 0.0
    %578 = vmatpush1.msra.mxu0 0.0
    %579 = vmatprep.subr.mxu0 0.0
    %580 = vmatpush1.msra.mxu0 0.0
    %581 = vmatprep.subr.mxu0 0.0
    %582 = vmatpush1.msra.mxu0 0.0
    %583 = vmatprep.subr.mxu0 0.0
    %584 = vmatpush1.msra.mxu0 0.0
    %585 = vmatprep.subr.mxu0 0.0
    %586 = vmatpush1.msra.mxu0 0.0
    %587 = vmatprep.subr.mxu0 0.0
    %588 = vmatpush1.msra.mxu0 0.0
    %589 = vmatprep.subr.mxu0 0.0
    %590 = vmatpush1.msra.mxu0 0.0
    %591 = vmatprep.subr.mxu0 0.0
    %592 = vmatpush1.msra.mxu0 0.0
    %593 = vmatprep.subr.mxu0 0.0
    %594 = vmatpush1.msra.mxu0 0.0
    %595 = vmatprep.subr.mxu0 0.0
    %596 = vmatpush1.msra.mxu0 0.0
    %597 = vmatprep.subr.mxu0 0.0
    %598 = vmatpush1.msra.mxu0 0.0
    %599 = vmatprep.subr.mxu0 0.0
    %600 = vmatpush1.msra.mxu0 0.0
    %601 = vmatprep.subr.mxu0 0.0
    %602 = vmatpush1.msra.mxu0 0.0
    %603 = vmatprep.subr.mxu0 0.0
    %604 = vmatpush1.msra.mxu0 0.0
    %605 = vmatprep.subr.mxu0 0.0
    %606 = vmatpush1.msra.mxu0 0.0
    %607 = vmatprep.subr.mxu0 0.0
    %608 = vmatpush1.msra.mxu0 0.0
    %609 = vmatprep.subr.mxu0 0.0
    %610 = vmatpush1.msra.mxu0 0.0
    %611 = vmatprep.subr.mxu0 0.0
    %612 = vmatpush1.msra.mxu0 0.0
    %613 = vmatprep.subr.mxu0 0.0
    %614 = vmatpush1.msra.mxu0 0.0
    %615 = vmatprep.subr.mxu0 0.0
    %616 = vmatpush1.msra.mxu0 0.0
    %617 = vmatprep.subr.mxu0 0.0
    %618 = vmatpush1.msra.mxu0 0.0
    %619 = vmatprep.subr.mxu0 0.0
    %620 = vmatpush1.msra.mxu0 0.0
    %621 = vmatprep.mubr.f32.mxu0 0.0
    %622 = vmatmul.mubr.f32.gmra.mrb[0].mxu0 %v555
    %v623 = vpop.f32.mrb[0].mxu0
    %v624 = vadd.f32 %v36, %v623
    %v625 = vpop.f32.mrb[0].mxu0
    %626 = vdwg.mxu0
    %v627 = vxor.u32 %v624, 2147483648
    %v628 = vmul.f32 %v627, 1.442695
    %v629 = vpow.pop %v628
    %v630 = vadd.f32 %v629, 1.0
    %v631 = vrcp.pop %v630
    %v632 = vmul.f32 1.0, %v631
    %v633 = vtanh.pop %v624
    %v634 = vmul.f32 %v632, %v542
    %636 = vrot.lane.b32.xlu0 %v633, 110
    %v637 = vpop.permute.xlu0 %636
    %v639 = vmul.f32 %v632, %v637
    %641 = vrot.lane.b32.xlu0 %v639, 6
    %v642 = vpop.permute.xlu0 %641
    %v644 = vadd.f32 %v634, %v642
    %v645 = vtanh.pop %v644
    %647 = vrot.lane.b32.xlu0 %v645, 6
    %v648 = vpop.permute.xlu0 %647
    %v650 = vmul.f32 %v632, %v648
    %652 = vrot.lane.b32.xlu0 %v650, 122
    %v653 = vpop.permute.xlu0 %652
    %v655 = vsel %vm37, %v31, %v653
    %v657 = vsel %vm39, %v655, 0
    %659 = vmatprep.subr.mxu0 0.0
    %660 = vmatpush1.msra.mxu0 %v34
    %661 = vmatprep.subr.mxu0 0.0
    %662 = vmatpush1.msra.mxu0 %v45
    %663 = vmatprep.subr.mxu0 0.0
    %664 = vmatpush1.msra.mxu0 0.0
    %665 = vmatprep.subr.mxu0 0.0
    %666 = vmatpush1.msra.mxu0 0.0
    %667 = vmatprep.subr.mxu0 0.0
    %668 = vmatpush1.msra.mxu0 0.0
    %669 = vmatprep.subr.mxu0 0.0
    %670 = vmatpush1.msra.mxu0 0.0
    %671 = vmatprep.subr.mxu0 0.0
    %672 = vmatpush1.msra.mxu0 0.0
    %673 = vmatprep.subr.mxu0 0.0
    %674 = vmatpush1.msra.mxu0 0.0
    %675 = vmatprep.subr.mxu0 0.0
    %676 = vmatpush1.msra.mxu0 0.0
    %677 = vmatprep.subr.mxu0 0.0
    %678 = vmatpush1.msra.mxu0 0.0
    %679 = vmatprep.subr.mxu0 0.0
    %680 = vmatpush1.msra.mxu0 0.0
    %681 = vmatprep.subr.mxu0 0.0
    %682 = vmatpush1.msra.mxu0 0.0
    %683 = vmatprep.subr.mxu0 0.0
    %684 = vmatpush1.msra.mxu0 0.0
    %685 = vmatprep.subr.mxu0 0.0
    %686 = vmatpush1.msra.mxu0 0.0
    %687 = vmatprep.subr.mxu0 0.0
    %688 = vmatpush1.msra.mxu0 0.0
    %689 = vmatprep.subr.mxu0 0.0
    %690 = vmatpush1.msra.mxu0 0.0
    %691 = vmatprep.subr.mxu0 0.0
    %692 = vmatpush1.msra.mxu0 0.0
    %693 = vmatprep.subr.mxu0 0.0
    %694 = vmatpush1.msra.mxu0 0.0
    %695 = vmatprep.subr.mxu0 0.0
    %696 = vmatpush1.msra.mxu0 0.0
    %697 = vmatprep.subr.mxu0 0.0
    %698 = vmatpush1.msra.mxu0 0.0
    %699 = vmatprep.subr.mxu0 0.0
    %700 = vmatpush1.msra.mxu0 0.0
    %701 = vmatprep.subr.mxu0 0.0
    %702 = vmatpush1.msra.mxu0 0.0
    %703 = vmatprep.subr.mxu0 0.0
    %704 = vmatpush1.msra.mxu0 0.0
    %705 = vmatprep.subr.mxu0 0.0
    %706 = vmatpush1.msra.mxu0 0.0
    %707 = vmatprep.subr.mxu0 0.0
    %708 = vmatpush1.msra.mxu0 0.0
    %709 = vmatprep.subr.mxu0 0.0
    %710 = vmatpush1.msra.mxu0 0.0
    %711 = vmatprep.subr.mxu0 0.0
    %712 = vmatpush1.msra.mxu0 0.0
    %713 = vmatprep.subr.mxu0 0.0
    %714 = vmatpush1.msra.mxu0 0.0
    %715 = vmatprep.subr.mxu0 0.0
    %716 = vmatpush1.msra.mxu0 0.0
    %717 = vmatprep.subr.mxu0 0.0
    %718 = vmatpush1.msra.mxu0 0.0
    %719 = vmatprep.subr.mxu0 0.0
    %720 = vmatpush1.msra.mxu0 0.0
    %721 = vmatprep.subr.mxu0 0.0
    %722 = vmatpush1.msra.mxu0 0.0
    %723 = vmatprep.mubr.f32.mxu0 0.0
    %724 = vmatmul.mubr.f32.gmra.mrb[0].mxu0 %v657
    %v725 = vpop.f32.mrb[0].mxu0
    %v726 = vadd.f32 %v36, %v725
    %v727 = vpop.f32.mrb[0].mxu0
    %728 = vdwg.mxu0
    %v729 = vxor.u32 %v726, 2147483648
    %v730 = vmul.f32 %v729, 1.442695
    %v731 = vpow.pop %v730
    %v732 = vadd.f32 %v731, 1.0
    %v733 = vrcp.pop %v732
    %v734 = vmul.f32 1.0, %v733
    %v735 = vtanh.pop %v726
    %v736 = vmul.f32 %v734, %v644
    %738 = vrot.lane.b32.xlu0 %v735, 110
    %v739 = vpop.permute.xlu0 %738
    %v741 = vmul.f32 %v734, %v739
    %743 = vrot.lane.b32.xlu0 %v741, 6
    %v744 = vpop.permute.xlu0 %743
    %v746 = vadd.f32 %v736, %v744
    %v747 = vtanh.pop %v746
    %749 = vrot.lane.b32.xlu0 %v747, 6
    %v750 = vpop.permute.xlu0 %749
    %v752 = vmul.f32 %v734, %v750
    %754 = vrot.lane.b32.xlu0 %v752, 122
    %v755 = vpop.permute.xlu0 %754
    %v757 = vsel %vm37, %v33, %v755
    %v759 = vsel %vm39, %v757, 0
    %761 = vmatprep.subr.mxu0 0.0
    %762 = vmatpush1.msra.mxu0 %v34
    %763 = vmatprep.subr.mxu0 0.0
    %764 = vmatpush1.msra.mxu0 %v45
    %765 = vmatprep.subr.mxu0 0.0
    %766 = vmatpush1.msra.mxu0 0.0
    %767 = vmatprep.subr.mxu0 0.0
    %768 = vmatpush1.msra.mxu0 0.0
    %769 = vmatprep.subr.mxu0 0.0
    %770 = vmatpush1.msra.mxu0 0.0
    %771 = vmatprep.subr.mxu0 0.0
    %772 = vmatpush1.msra.mxu0 0.0
    %773 = vmatprep.subr.mxu0 0.0
    %774 = vmatpush1.msra.mxu0 0.0
    %775 = vmatprep.subr.mxu0 0.0
    %776 = vmatpush1.msra.mxu0 0.0
    %777 = vmatprep.subr.mxu0 0.0
    %778 = vmatpush1.msra.mxu0 0.0
    %779 = vmatprep.subr.mxu0 0.0
    %780 = vmatpush1.msra.mxu0 0.0
    %781 = vmatprep.subr.mxu0 0.0
    %782 = vmatpush1.msra.mxu0 0.0
    %783 = vmatprep.subr.mxu0 0.0
    %784 = vmatpush1.msra.mxu0 0.0
    %785 = vmatprep.subr.mxu0 0.0
    %786 = vmatpush1.msra.mxu0 0.0
    %787 = vmatprep.subr.mxu0 0.0
    %788 = vmatpush1.msra.mxu0 0.0
    %789 = vmatprep.subr.mxu0 0.0
    %790 = vmatpush1.msra.mxu0 0.0
    %791 = vmatprep.subr.mxu0 0.0
    %792 = vmatpush1.msra.mxu0 0.0
    %793 = vmatprep.subr.mxu0 0.0
    %794 = vmatpush1.msra.mxu0 0.0
    %795 = vmatprep.subr.mxu0 0.0
    %796 = vmatpush1.msra.mxu0 0.0
    %797 = vmatprep.subr.mxu0 0.0
    %798 = vmatpush1.msra.mxu0 0.0
    %799 = vmatprep.subr.mxu0 0.0
    %800 = vmatpush1.msra.mxu0 0.0
    %801 = vmatprep.subr.mxu0 0.0
    %802 = vmatpush1.msra.mxu0 0.0
    %803 = vmatprep.subr.mxu0 0.0
    %804 = vmatpush1.msra.mxu0 0.0
    %805 = vmatprep.subr.mxu0 0.0
    %806 = vmatpush1.msra.mxu0 0.0
    %807 = vmatprep.subr.mxu0 0.0
    %808 = vmatpush1.msra.mxu0 0.0
    %809 = vmatprep.subr.mxu0 0.0
    %810 = vmatpush1.msra.mxu0 0.0
    %811 = vmatprep.subr.mxu0 0.0
    %812 = vmatpush1.msra.mxu0 0.0
    %813 = vmatprep.subr.mxu0 0.0
    %814 = vmatpush1.msra.mxu0 0.0
    %815 = vmatprep.subr.mxu0 0.0
    %816 = vmatpush1.msra.mxu0 0.0
    %817 = vmatprep.subr.mxu0 0.0
    %818 = vmatpush1.msra.mxu0 0.0
    %819 = vmatprep.subr.mxu0 0.0
    %820 = vmatpush1.msra.mxu0 0.0
    %821 = vmatprep.subr.mxu0 0.0
    %822 = vmatpush1.msra.mxu0 0.0
    %823 = vmatprep.subr.mxu0 0.0
    %824 = vmatpush1.msra.mxu0 0.0
    %825 = vmatprep.mubr.f32.mxu0 0.0
    %826 = vmatmul.mubr.f32.gmra.mrb[0].mxu0 %v759
    %v827 = vpop.f32.mrb[0].mxu0
    %v828 = vadd.f32 %v36, %v827
    %v829 = vpop.f32.mrb[0].mxu0
    %830 = vdwg.mxu0
    %v831 = vxor.u32 %v828, 2147483648
    %v832 = vmul.f32 %v831, 1.442695
    %v833 = vpow.pop %v832
    %v834 = vadd.f32 %v833, 1.0
    %v835 = vrcp.pop %v834
    %v836 = vmul.f32 1.0, %v835
    %v837 = vtanh.pop %v828
    %v838 = vmul.f32 %v836, %v746
    %840 = vrot.lane.b32.xlu0 %v837, 110
    %v841 = vpop.permute.xlu0 %840
    %v843 = vmul.f32 %v836, %v841
    %845 = vrot.lane.b32.xlu0 %v843, 6
    %v846 = vpop.permute.xlu0 %845
    %v848 = vadd.f32 %v838, %v846
    %v849 = vtanh.pop %v848
    %851 = vrot.lane.b32.xlu0 %v849, 6
    %v852 = vpop.permute.xlu0 %851
    %v854 = vmul.f32 %v836, %v852
    %856 = vrot.lane.b32.xlu0 %v854, 116
    %v857 = vpop.permute.xlu0 %856
    %vm859 = vcmask 40960
    %860 = vst.msk [vmem:[#allocation2] sm:$0x1] %vm859, %v857
    %862 = vrot.lane.b32.xlu0 %v848, 122
    %v863 = vpop.permute.xlu0 %862
    %865 = vst.msk [vmem:[#allocation4] sm:$0x1] %vm859, %v863
    %s866 = scalar_lea.vmem %s1, 16
    %v867 = vld [vmem:[%s866] sm:$0xff]
    %v868 = vld [vmem:[%s866 + $0x8] sm:$0xf]
    %s869 = scalar_lea.vmem %s2, 1
    %v870 = vld [vmem:[%s869] sm:$0x1]
    %871 = vrot.lane.b32.xlu0 %v140, 116
    %v872 = vpop.permute.xlu0 %871
    %v874 = vsel %vm37, %v872, 0.0
    %v876 = vsel %vm39, %v874, 0
    %v879 = vsel %vm43, %v868, 0
    %881 = vmatprep.subr.mxu0 0.0
    %882 = vmatpush1.msra.mxu0 %v867
    %883 = vmatprep.subr.mxu0 0.0
    %884 = vmatpush1.msra.mxu0 %v879
    %885 = vmatprep.subr.mxu0 0.0
    %886 = vmatpush1.msra.mxu0 0.0
    %887 = vmatprep.subr.mxu0 0.0
    %888 = vmatpush1.msra.mxu0 0.0
    %889 = vmatprep.subr.mxu0 0.0
    %890 = vmatpush1.msra.mxu0 0.0
    %891 = vmatprep.subr.mxu0 0.0
    %892 = vmatpush1.msra.mxu0 0.0
    %893 = vmatprep.subr.mxu0 0.0
    %894 = vmatpush1.msra.mxu0 0.0
    %895 = vmatprep.subr.mxu0 0.0
    %896 = vmatpush1.msra.mxu0 0.0
    %897 = vmatprep.subr.mxu0 0.0
    %898 = vmatpush1.msra.mxu0 0.0
    %899 = vmatprep.subr.mxu0 0.0
    %900 = vmatpush1.msra.mxu0 0.0
    %901 = vmatprep.subr.mxu0 0.0
    %902 = vmatpush1.msra.mxu0 0.0
    %903 = vmatprep.subr.mxu0 0.0
    %904 = vmatpush1.msra.mxu0 0.0
    %905 = vmatprep.subr.mxu0 0.0
    %906 = vmatpush1.msra.mxu0 0.0
    %907 = vmatprep.subr.mxu0 0.0
    %908 = vmatpush1.msra.mxu0 0.0
    %909 = vmatprep.subr.mxu0 0.0
    %910 = vmatpush1.msra.mxu0 0.0
    %911 = vmatprep.subr.mxu0 0.0
    %912 = vmatpush1.msra.mxu0 0.0
    %913 = vmatprep.subr.mxu0 0.0
    %914 = vmatpush1.msra.mxu0 0.0
    %915 = vmatprep.subr.mxu0 0.0
    %916 = vmatpush1.msra.mxu0 0.0
    %917 = vmatprep.subr.mxu0 0.0
    %918 = vmatpush1.msra.mxu0 0.0
    %919 = vmatprep.subr.mxu0 0.0
    %920 = vmatpush1.msra.mxu0 0.0
    %921 = vmatprep.subr.mxu0 0.0
    %922 = vmatpush1.msra.mxu0 0.0
    %923 = vmatprep.subr.mxu0 0.0
    %924 = vmatpush1.msra.mxu0 0.0
    %925 = vmatprep.subr.mxu0 0.0
    %926 = vmatpush1.msra.mxu0 0.0
    %927 = vmatprep.subr.mxu0 0.0
    %928 = vmatpush1.msra.mxu0 0.0
    %929 = vmatprep.subr.mxu0 0.0
    %930 = vmatpush1.msra.mxu0 0.0
    %931 = vmatprep.subr.mxu0 0.0
    %932 = vmatpush1.msra.mxu0 0.0
    %933 = vmatprep.subr.mxu0 0.0
    %934 = vmatpush1.msra.mxu0 0.0
    %935 = vmatprep.subr.mxu0 0.0
    %936 = vmatpush1.msra.mxu0 0.0
    %937 = vmatprep.subr.mxu0 0.0
    %938 = vmatpush1.msra.mxu0 0.0
    %939 = vmatprep.subr.mxu0 0.0
    %940 = vmatpush1.msra.mxu0 0.0
    %941 = vmatprep.subr.mxu0 0.0
    %942 = vmatpush1.msra.mxu0 0.0
    %943 = vmatprep.subr.mxu0 0.0
    %944 = vmatpush1.msra.mxu0 0.0
    %945 = vmatprep.mubr.f32.mxu0 0.0
    %946 = vmatmul.mubr.f32.gmra.mrb[0].mxu0 %v876
    %v947 = vpop.f32.mrb[0].mxu0
    %v948 = vadd.f32 %v870, %v947
    %v949 = vpop.f32.mrb[0].mxu0
    %950 = vdwg.mxu0
    %v951 = vxor.u32 %v948, 2147483648
    %v952 = vmul.f32 %v951, 1.442695
    %v953 = vpow.pop %v952
    %v954 = vadd.f32 %v953, 1.0
    %v955 = vrcp.pop %v954
    %v956 = vmul.f32 1.0, %v955
    %v957 = vtanh.pop %v948
    %v958 = vmul.f32 %v956, 0.0
    %960 = vrot.lane.b32.xlu0 %v957, 110
    %v961 = vpop.permute.xlu0 %960
    %v963 = vmul.f32 %v956, %v961
    %965 = vrot.lane.b32.xlu0 %v963, 6
    %v966 = vpop.permute.xlu0 %965
    %v968 = vadd.f32 %v958, %v966
    %v969 = vtanh.pop %v968
    %971 = vrot.lane.b32.xlu0 %v969, 6
    %v972 = vpop.permute.xlu0 %971
    %v974 = vmul.f32 %v956, %v972
    %975 = vrot.lane.b32.xlu0 %v242, 116
    %v976 = vpop.permute.xlu0 %975
    %979 = vrot.lane.b32.xlu0 %v974, 122
    %v980 = vpop.permute.xlu0 %979
    %v982 = vsel %vm37, %v976, %v980
    %v984 = vsel %vm39, %v982, 0
    %986 = vmatprep.subr.mxu0 0.0
    %987 = vmatpush1.msra.mxu0 %v867
    %988 = vmatprep.subr.mxu0 0.0
    %989 = vmatpush1.msra.mxu0 %v879
    %990 = vmatprep.subr.mxu0 0.0
    %991 = vmatpush1.msra.mxu0 0.0
    %992 = vmatprep.subr.mxu0 0.0
    %993 = vmatpush1.msra.mxu0 0.0
    %994 = vmatprep.subr.mxu0 0.0
    %995 = vmatpush1.msra.mxu0 0.0
    %996 = vmatprep.subr.mxu0 0.0
    %997 = vmatpush1.msra.mxu0 0.0
    %998 = vmatprep.subr.mxu0 0.0
    %999 = vmatpush1.msra.mxu0 0.0
    %1000 = vmatprep.subr.mxu0 0.0
    %1001 = vmatpush1.msra.mxu0 0.0
    %1002 = vmatprep.subr.mxu0 0.0
    %1003 = vmatpush1.msra.mxu0 0.0
    %1004 = vmatprep.subr.mxu0 0.0
    %1005 = vmatpush1.msra.mxu0 0.0
    %1006 = vmatprep.subr.mxu0 0.0
    %1007 = vmatpush1.msra.mxu0 0.0
    %1008 = vmatprep.subr.mxu0 0.0
    %1009 = vmatpush1.msra.mxu0 0.0
    %1010 = vmatprep.subr.mxu0 0.0
    %1011 = vmatpush1.msra.mxu0 0.0
    %1012 = vmatprep.subr.mxu0 0.0
    %1013 = vmatpush1.msra.mxu0 0.0
    %1014 = vmatprep.subr.mxu0 0.0
    %1015 = vmatpush1.msra.mxu0 0.0
    %1016 = vmatprep.subr.mxu0 0.0
    %1017 = vmatpush1.msra.mxu0 0.0
    %1018 = vmatprep.subr.mxu0 0.0
    %1019 = vmatpush1.msra.mxu0 0.0
    %1020 = vmatprep.subr.mxu0 0.0
    %1021 = vmatpush1.msra.mxu0 0.0
    %1022 = vmatprep.subr.mxu0 0.0
    %1023 = vmatpush1.msra.mxu0 0.0
    %1024 = vmatprep.subr.mxu0 0.0
    %1025 = vmatpush1.msra.mxu0 0.0
    %1026 = vmatprep.subr.mxu0 0.0
    %1027 = vmatpush1.msra.mxu0 0.0
    %1028 = vmatprep.subr.mxu0 0.0
    %1029 = vmatpush1.msra.mxu0 0.0
    %1030 = vmatprep.subr.mxu0 0.0
    %1031 = vmatpush1.msra.mxu0 0.0
    %1032 = vmatprep.subr.mxu0 0.0
    %1033 = vmatpush1.msra.mxu0 0.0
    %1034 = vmatprep.subr.mxu0 0.0
    %1035 = vmatpush1.msra.mxu0 0.0
    %1036 = vmatprep.subr.mxu0 0.0
    %1037 = vmatpush1.msra.mxu0 0.0
    %1038 = vmatprep.subr.mxu0 0.0
    %1039 = vmatpush1.msra.mxu0 0.0
    %1040 = vmatprep.subr.mxu0 0.0
    %1041 = vmatpush1.msra.mxu0 0.0
    %1042 = vmatprep.subr.mxu0 0.0
    %1043 = vmatpush1.msra.mxu0 0.0
    %1044 = vmatprep.subr.mxu0 0.0
    %1045 = vmatpush1.msra.mxu0 0.0
    %1046 = vmatprep.subr.mxu0 0.0
    %1047 = vmatpush1.msra.mxu0 0.0
    %1048 = vmatprep.subr.mxu0 0.0
    %1049 = vmatpush1.msra.mxu0 0.0
    %1050 = vmatprep.mubr.f32.mxu0 0.0
    %1051 = vmatmul.mubr.f32.gmra.mrb[0].mxu0 %v984
    %v1052 = vpop.f32.mrb[0].mxu0
    %v1053 = vadd.f32 %v870, %v1052
    %v1054 = vpop.f32.mrb[0].mxu0
    %1055 = vdwg.mxu0
    %v1056 = vxor.u32 %v1053, 2147483648
    %v1057 = vmul.f32 %v1056, 1.442695
    %v1058 = vpow.pop %v1057
    %v1059 = vadd.f32 %v1058, 1.0
    %v1060 = vrcp.pop %v1059
    %v1061 = vmul.f32 1.0, %v1060
    %v1062 = vtanh.pop %v1053
    %v1063 = vmul.f32 %v1061, %v968
    %1065 = vrot.lane.b32.xlu0 %v1062, 110
    %v1066 = vpop.permute.xlu0 %1065
    %v1068 = vmul.f32 %v1061, %v1066
    %1070 = vrot.lane.b32.xlu0 %v1068, 6
    %v1071 = vpop.permute.xlu0 %1070
    %v1073 = vadd.f32 %v1063, %v1071
    %v1074 = vtanh.pop %v1073
    %1076 = vrot.lane.b32.xlu0 %v1074, 6
    %v1077 = vpop.permute.xlu0 %1076
    %v1079 = vmul.f32 %v1061, %v1077
    %1080 = vrot.lane.b32.xlu0 %v344, 116
    %v1081 = vpop.permute.xlu0 %1080
    %1084 = vrot.lane.b32.xlu0 %v1079, 122
    %v1085 = vpop.permute.xlu0 %1084
    %v1087 = vsel %vm37, %v1081, %v1085
    %v1089 = vsel %vm39, %v1087, 0
    %1091 = vmatprep.subr.mxu0 0.0
    %1092 = vmatpush1.msra.mxu0 %v867
    %1093 = vmatprep.subr.mxu0 0.0
    %1094 = vmatpush1.msra.mxu0 %v879
    %1095 = vmatprep.subr.mxu0 0.0
    %1096 = vmatpush1.msra.mxu0 0.0
    %1097 = vmatprep.subr.mxu0 0.0
    %1098 = vmatpush1.msra.mxu0 0.0
    %1099 = vmatprep.subr.mxu0 0.0
    %1100 = vmatpush1.msra.mxu0 0.0
    %1101 = vmatprep.subr.mxu0 0.0
    %1102 = vmatpush1.msra.mxu0 0.0
    %1103 = vmatprep.subr.mxu0 0.0
    %1104 = vmatpush1.msra.mxu0 0.0
    %1105 = vmatprep.subr.mxu0 0.0
    %1106 = vmatpush1.msra.mxu0 0.0
    %1107 = vmatprep.subr.mxu0 0.0
    %1108 = vmatpush1.msra.mxu0 0.0
    %1109 = vmatprep.subr.mxu0 0.0
    %1110 = vmatpush1.msra.mxu0 0.0
    %1111 = vmatprep.subr.mxu0 0.0
    %1112 = vmatpush1.msra.mxu0 0.0
    %1113 = vmatprep.subr.mxu0 0.0
    %1114 = vmatpush1.msra.mxu0 0.0
    %1115 = vmatprep.subr.mxu0 0.0
    %1116 = vmatpush1.msra.mxu0 0.0
    %1117 = vmatprep.subr.mxu0 0.0
    %1118 = vmatpush1.msra.mxu0 0.0
    %1119 = vmatprep.subr.mxu0 0.0
    %1120 = vmatpush1.msra.mxu0 0.0
    %1121 = vmatprep.subr.mxu0 0.0
    %1122 = vmatpush1.msra.mxu0 0.0
    %1123 = vmatprep.subr.mxu0 0.0
    %1124 = vmatpush1.msra.mxu0 0.0
    %1125 = vmatprep.subr.mxu0 0.0
    %1126 = vmatpush1.msra.mxu0 0.0
    %1127 = vmatprep.subr.mxu0 0.0
    %1128 = vmatpush1.msra.mxu0 0.0
    %1129 = vmatprep.subr.mxu0 0.0
    %1130 = vmatpush1.msra.mxu0 0.0
    %1131 = vmatprep.subr.mxu0 0.0
    %1132 = vmatpush1.msra.mxu0 0.0
    %1133 = vmatprep.subr.mxu0 0.0
    %1134 = vmatpush1.msra.mxu0 0.0
    %1135 = vmatprep.subr.mxu0 0.0
    %1136 = vmatpush1.msra.mxu0 0.0
    %1137 = vmatprep.subr.mxu0 0.0
    %1138 = vmatpush1.msra.mxu0 0.0
    %1139 = vmatprep.subr.mxu0 0.0
    %1140 = vmatpush1.msra.mxu0 0.0
    %1141 = vmatprep.subr.mxu0 0.0
    %1142 = vmatpush1.msra.mxu0 0.0
    %1143 = vmatprep.subr.mxu0 0.0
    %1144 = vmatpush1.msra.mxu0 0.0
    %1145 = vmatprep.subr.mxu0 0.0
    %1146 = vmatpush1.msra.mxu0 0.0
    %1147 = vmatprep.subr.mxu0 0.0
    %1148 = vmatpush1.msra.mxu0 0.0
    %1149 = vmatprep.subr.mxu0 0.0
    %1150 = vmatpush1.msra.mxu0 0.0
    %1151 = vmatprep.subr.mxu0 0.0
    %1152 = vmatpush1.msra.mxu0 0.0
    %1153 = vmatprep.subr.mxu0 0.0
    %1154 = vmatpush1.msra.mxu0 0.0
    %1155 = vmatprep.mubr.f32.mxu0 0.0
    %1156 = vmatmul.mubr.f32.gmra.mrb[0].mxu0 %v1089
    %v1157 = vpop.f32.mrb[0].mxu0
    %v1158 = vadd.f32 %v870, %v1157
    %v1159 = vpop.f32.mrb[0].mxu0
    %1160 = vdwg.mxu0
    %v1161 = vxor.u32 %v1158, 2147483648
    %v1162 = vmul.f32 %v1161, 1.442695
    %v1163 = vpow.pop %v1162
    %v1164 = vadd.f32 %v1163, 1.0
    %v1165 = vrcp.pop %v1164
    %v1166 = vmul.f32 1.0, %v1165
    %v1167 = vtanh.pop %v1158
    %v1168 = vmul.f32 %v1166, %v1073
    %1170 = vrot.lane.b32.xlu0 %v1167, 110
    %v1171 = vpop.permute.xlu0 %1170
    %v1173 = vmul.f32 %v1166, %v1171
    %1175 = vrot.lane.b32.xlu0 %v1173, 6
    %v1176 = vpop.permute.xlu0 %1175
    %v1178 = vadd.f32 %v1168, %v1176
    %v1179 = vtanh.pop %v1178
    %1181 = vrot.lane.b32.xlu0 %v1179, 6
    %v1182 = vpop.permute.xlu0 %1181
    %v1184 = vmul.f32 %v1166, %v1182
    %1185 = vrot.lane.b32.xlu0 %v446, 116
    %v1186 = vpop.permute.xlu0 %1185
    %1189 = vrot.lane.b32.xlu0 %v1184, 122
    %v1190 = vpop.permute.xlu0 %1189
    %v1192 = vsel %vm37, %v1186, %v1190
    %v1194 = vsel %vm39, %v1192, 0
    %1196 = vmatprep.subr.mxu0 0.0
    %1197 = vmatpush1.msra.mxu0 %v867
    %1198 = vmatprep.subr.mxu0 0.0
    %1199 = vmatpush1.msra.mxu0 %v879
    %1200 = vmatprep.subr.mxu0 0.0
    %1201 = vmatpush1.msra.mxu0 0.0
    %1202 = vmatprep.subr.mxu0 0.0
    %1203 = vmatpush1.msra.mxu0 0.0
    %1204 = vmatprep.subr.mxu0 0.0
    %1205 = vmatpush1.msra.mxu0 0.0
    %1206 = vmatprep.subr.mxu0 0.0
    %1207 = vmatpush1.msra.mxu0 0.0
    %1208 = vmatprep.subr.mxu0 0.0
    %1209 = vmatpush1.msra.mxu0 0.0
    %1210 = vmatprep.subr.mxu0 0.0
    %1211 = vmatpush1.msra.mxu0 0.0
    %1212 = vmatprep.subr.mxu0 0.0
    %1213 = vmatpush1.msra.mxu0 0.0
    %1214 = vmatprep.subr.mxu0 0.0
    %1215 = vmatpush1.msra.mxu0 0.0
    %1216 = vmatprep.subr.mxu0 0.0
    %1217 = vmatpush1.msra.mxu0 0.0
    %1218 = vmatprep.subr.mxu0 0.0
    %1219 = vmatpush1.msra.mxu0 0.0
    %1220 = vmatprep.subr.mxu0 0.0
    %1221 = vmatpush1.msra.mxu0 0.0
    %1222 = vmatprep.subr.mxu0 0.0
    %1223 = vmatpush1.msra.mxu0 0.0
    %1224 = vmatprep.subr.mxu0 0.0
    %1225 = vmatpush1.msra.mxu0 0.0
    %1226 = vmatprep.subr.mxu0 0.0
    %1227 = vmatpush1.msra.mxu0 0.0
    %1228 = vmatprep.subr.mxu0 0.0
    %1229 = vmatpush1.msra.mxu0 0.0
    %1230 = vmatprep.subr.mxu0 0.0
    %1231 = vmatpush1.msra.mxu0 0.0
    %1232 = vmatprep.subr.mxu0 0.0
    %1233 = vmatpush1.msra.mxu0 0.0
    %1234 = vmatprep.subr.mxu0 0.0
    %1235 = vmatpush1.msra.mxu0 0.0
    %1236 = vmatprep.subr.mxu0 0.0
    %1237 = vmatpush1.msra.mxu0 0.0
    %1238 = vmatprep.subr.mxu0 0.0
    %1239 = vmatpush1.msra.mxu0 0.0
    %1240 = vmatprep.subr.mxu0 0.0
    %1241 = vmatpush1.msra.mxu0 0.0
    %1242 = vmatprep.subr.mxu0 0.0
    %1243 = vmatpush1.msra.mxu0 0.0
    %1244 = vmatprep.subr.mxu0 0.0
    %1245 = vmatpush1.msra.mxu0 0.0
    %1246 = vmatprep.subr.mxu0 0.0
    %1247 = vmatpush1.msra.mxu0 0.0
    %1248 = vmatprep.subr.mxu0 0.0
    %1249 = vmatpush1.msra.mxu0 0.0
    %1250 = vmatprep.subr.mxu0 0.0
    %1251 = vmatpush1.msra.mxu0 0.0
    %1252 = vmatprep.subr.mxu0 0.0
    %1253 = vmatpush1.msra.mxu0 0.0
    %1254 = vmatprep.subr.mxu0 0.0
    %1255 = vmatpush1.msra.mxu0 0.0
    %1256 = vmatprep.subr.mxu0 0.0
    %1257 = vmatpush1.msra.mxu0 0.0
    %1258 = vmatprep.subr.mxu0 0.0
    %1259 = vmatpush1.msra.mxu0 0.0
    %1260 = vmatprep.mubr.f32.mxu0 0.0
    %1261 = vmatmul.mubr.f32.gmra.mrb[0].mxu0 %v1194
    %v1262 = vpop.f32.mrb[0].mxu0
    %v1263 = vadd.f32 %v870, %v1262
    %v1264 = vpop.f32.mrb[0].mxu0
    %1265 = vdwg.mxu0
    %v1266 = vxor.u32 %v1263, 2147483648
    %v1267 = vmul.f32 %v1266, 1.442695
    %v1268 = vpow.pop %v1267
    %v1269 = vadd.f32 %v1268, 1.0
    %v1270 = vrcp.pop %v1269
    %v1271 = vmul.f32 1.0, %v1270
    %v1272 = vtanh.pop %v1263
    %v1273 = vmul.f32 %v1271, %v1178
    %1275 = vrot.lane.b32.xlu0 %v1272, 110
    %v1276 = vpop.permute.xlu0 %1275
    %v1278 = vmul.f32 %v1271, %v1276
    %1280 = vrot.lane.b32.xlu0 %v1278, 6
    %v1281 = vpop.permute.xlu0 %1280
    %v1283 = vadd.f32 %v1273, %v1281
    %v1284 = vtanh.pop %v1283
    %1286 = vrot.lane.b32.xlu0 %v1284, 6
    %v1287 = vpop.permute.xlu0 %1286
    %v1289 = vmul.f32 %v1271, %v1287
    %1290 = vrot.lane.b32.xlu0 %v548, 116
    %v1291 = vpop.permute.xlu0 %1290
    %1294 = vrot.lane.b32.xlu0 %v1289, 122
    %v1295 = vpop.permute.xlu0 %1294
    %v1297 = vsel %vm37, %v1291, %v1295
    %v1299 = vsel %vm39, %v1297, 0
    %1301 = vmatprep.subr.mxu0 0.0
    %1302 = vmatpush1.msra.mxu0 %v867
    %1303 = vmatprep.subr.mxu0 0.0
    %1304 = vmatpush1.msra.mxu0 %v879
    %1305 = vmatprep.subr.mxu0 0.0
    %1306 = vmatpush1.msra.mxu0 0.0
    %1307 = vmatprep.subr.mxu0 0.0
    %1308 = vmatpush1.msra.mxu0 0.0
    %1309 = vmatprep.subr.mxu0 0.0
    %1310 = vmatpush1.msra.mxu0 0.0
    %1311 = vmatprep.subr.mxu0 0.0
    %1312 = vmatpush1.msra.mxu0 0.0
    %1313 = vmatprep.subr.mxu0 0.0
    %1314 = vmatpush1.msra.mxu0 0.0
    %1315 = vmatprep.subr.mxu0 0.0
    %1316 = vmatpush1.msra.mxu0 0.0
    %1317 = vmatprep.subr.mxu0 0.0
    %1318 = vmatpush1.msra.mxu0 0.0
    %1319 = vmatprep.subr.mxu0 0.0
    %1320 = vmatpush1.msra.mxu0 0.0
    %1321 = vmatprep.subr.mxu0 0.0
    %1322 = vmatpush1.msra.mxu0 0.0
    %1323 = vmatprep.subr.mxu0 0.0
    %1324 = vmatpush1.msra.mxu0 0.0
    %1325 = vmatprep.subr.mxu0 0.0
    %1326 = vmatpush1.msra.mxu0 0.0
    %1327 = vmatprep.subr.mxu0 0.0
    %1328 = vmatpush1.msra.mxu0 0.0
    %1329 = vmatprep.subr.mxu0 0.0
    %1330 = vmatpush1.msra.mxu0 0.0
    %1331 = vmatprep.subr.mxu0 0.0
    %1332 = vmatpush1.msra.mxu0 0.0
    %1333 = vmatprep.subr.mxu0 0.0
    %1334 = vmatpush1.msra.mxu0 0.0
    %1335 = vmatprep.subr.mxu0 0.0
    %1336 = vmatpush1.msra.mxu0 0.0
    %1337 = vmatprep.subr.mxu0 0.0
    %1338 = vmatpush1.msra.mxu0 0.0
    %1339 = vmatprep.subr.mxu0 0.0
    %1340 = vmatpush1.msra.mxu0 0.0
    %1341 = vmatprep.subr.mxu0 0.0
    %1342 = vmatpush1.msra.mxu0 0.0
    %1343 = vmatprep.subr.mxu0 0.0
    %1344 = vmatpush1.msra.mxu0 0.0
    %1345 = vmatprep.subr.mxu0 0.0
    %1346 = vmatpush1.msra.mxu0 0.0
    %1347 = vmatprep.subr.mxu0 0.0
    %1348 = vmatpush1.msra.mxu0 0.0
    %1349 = vmatprep.subr.mxu0 0.0
    %1350 = vmatpush1.msra.mxu0 0.0
    %1351 = vmatprep.subr.mxu0 0.0
    %1352 = vmatpush1.msra.mxu0 0.0
    %1353 = vmatprep.subr.mxu0 0.0
    %1354 = vmatpush1.msra.mxu0 0.0
    %1355 = vmatprep.subr.mxu0 0.0
    %1356 = vmatpush1.msra.mxu0 0.0
    %1357 = vmatprep.subr.mxu0 0.0
    %1358 = vmatpush1.msra.mxu0 0.0
    %1359 = vmatprep.subr.mxu0 0.0
    %1360 = vmatpush1.msra.mxu0 0.0
    %1361 = vmatprep.subr.mxu0 0.0
    %1362 = vmatpush1.msra.mxu0 0.0
    %1363 = vmatprep.subr.mxu0 0.0
    %1364 = vmatpush1.msra.mxu0 0.0
    %1365 = vmatprep.mubr.f32.mxu0 0.0
    %1366 = vmatmul.mubr.f32.gmra.mrb[0].mxu0 %v1299
    %v1367 = vpop.f32.mrb[0].mxu0
    %v1368 = vadd.f32 %v870, %v1367
    %v1369 = vpop.f32.mrb[0].mxu0
    %1370 = vdwg.mxu0
    %v1371 = vxor.u32 %v1368, 2147483648
    %v1372 = vmul.f32 %v1371, 1.442695
    %v1373 = vpow.pop %v1372
    %v1374 = vadd.f32 %v1373, 1.0
    %v1375 = vrcp.pop %v1374
    %v1376 = vmul.f32 1.0, %v1375
    %v1377 = vtanh.pop %v1368
    %v1378 = vmul.f32 %v1376, %v1283
    %1380 = vrot.lane.b32.xlu0 %v1377, 110
    %v1381 = vpop.permute.xlu0 %1380
    %v1383 = vmul.f32 %v1376, %v1381
    %1385 = vrot.lane.b32.xlu0 %v1383, 6
    %v1386 = vpop.permute.xlu0 %1385
    %v1388 = vadd.f32 %v1378, %v1386
    %v1389 = vtanh.pop %v1388
    %1391 = vrot.lane.b32.xlu0 %v1389, 6
    %v1392 = vpop.permute.xlu0 %1391
    %v1394 = vmul.f32 %v1376, %v1392
    %1395 = vrot.lane.b32.xlu0 %v650, 116
    %v1396 = vpop.permute.xlu0 %1395
    %1399 = vrot.lane.b32.xlu0 %v1394, 122
    %v1400 = vpop.permute.xlu0 %1399
    %v1402 = vsel %vm37, %v1396, %v1400
    %v1404 = vsel %vm39, %v1402, 0
    %1406 = vmatprep.subr.mxu0 0.0
    %1407 = vmatpush1.msra.mxu0 %v867
    %1408 = vmatprep.subr.mxu0 0.0
    %1409 = vmatpush1.msra.mxu0 %v879
    %1410 = vmatprep.subr.mxu0 0.0
    %1411 = vmatpush1.msra.mxu0 0.0
    %1412 = vmatprep.subr.mxu0 0.0
    %1413 = vmatpush1.msra.mxu0 0.0
    %1414 = vmatprep.subr.mxu0 0.0
    %1415 = vmatpush1.msra.mxu0 0.0
    %1416 = vmatprep.subr.mxu0 0.0
    %1417 = vmatpush1.msra.mxu0 0.0
    %1418 = vmatprep.subr.mxu0 0.0
    %1419 = vmatpush1.msra.mxu0 0.0
    %1420 = vmatprep.subr.mxu0 0.0
    %1421 = vmatpush1.msra.mxu0 0.0
    %1422 = vmatprep.subr.mxu0 0.0
    %1423 = vmatpush1.msra.mxu0 0.0
    %1424 = vmatprep.subr.mxu0 0.0
    %1425 = vmatpush1.msra.mxu0 0.0
    %1426 = vmatprep.subr.mxu0 0.0
    %1427 = vmatpush1.msra.mxu0 0.0
    %1428 = vmatprep.subr.mxu0 0.0
    %1429 = vmatpush1.msra.mxu0 0.0
    %1430 = vmatprep.subr.mxu0 0.0
    %1431 = vmatpush1.msra.mxu0 0.0
    %1432 = vmatprep.subr.mxu0 0.0
    %1433 = vmatpush1.msra.mxu0 0.0
    %1434 = vmatprep.subr.mxu0 0.0
    %1435 = vmatpush1.msra.mxu0 0.0
    %1436 = vmatprep.subr.mxu0 0.0
    %1437 = vmatpush1.msra.mxu0 0.0
    %1438 = vmatprep.subr.mxu0 0.0
    %1439 = vmatpush1.msra.mxu0 0.0
    %1440 = vmatprep.subr.mxu0 0.0
    %1441 = vmatpush1.msra.mxu0 0.0
    %1442 = vmatprep.subr.mxu0 0.0
    %1443 = vmatpush1.msra.mxu0 0.0
    %1444 = vmatprep.subr.mxu0 0.0
    %1445 = vmatpush1.msra.mxu0 0.0
    %1446 = vmatprep.subr.mxu0 0.0
    %1447 = vmatpush1.msra.mxu0 0.0
    %1448 = vmatprep.subr.mxu0 0.0
    %1449 = vmatpush1.msra.mxu0 0.0
    %1450 = vmatprep.subr.mxu0 0.0
    %1451 = vmatpush1.msra.mxu0 0.0
    %1452 = vmatprep.subr.mxu0 0.0
    %1453 = vmatpush1.msra.mxu0 0.0
    %1454 = vmatprep.subr.mxu0 0.0
    %1455 = vmatpush1.msra.mxu0 0.0
    %1456 = vmatprep.subr.mxu0 0.0
    %1457 = vmatpush1.msra.mxu0 0.0
    %1458 = vmatprep.subr.mxu0 0.0
    %1459 = vmatpush1.msra.mxu0 0.0
    %1460 = vmatprep.subr.mxu0 0.0
    %1461 = vmatpush1.msra.mxu0 0.0
    %1462 = vmatprep.subr.mxu0 0.0
    %1463 = vmatpush1.msra.mxu0 0.0
    %1464 = vmatprep.subr.mxu0 0.0
    %1465 = vmatpush1.msra.mxu0 0.0
    %1466 = vmatprep.subr.mxu0 0.0
    %1467 = vmatpush1.msra.mxu0 0.0
    %1468 = vmatprep.subr.mxu0 0.0
    %1469 = vmatpush1.msra.mxu0 0.0
    %1470 = vmatprep.mubr.f32.mxu0 0.0
    %1471 = vmatmul.mubr.f32.gmra.mrb[0].mxu0 %v1404
    %v1472 = vpop.f32.mrb[0].mxu0
    %v1473 = vadd.f32 %v870, %v1472
    %v1474 = vpop.f32.mrb[0].mxu0
    %1475 = vdwg.mxu0
    %v1476 = vxor.u32 %v1473, 2147483648
    %v1477 = vmul.f32 %v1476, 1.442695
    %v1478 = vpow.pop %v1477
    %v1479 = vadd.f32 %v1478, 1.0
    %v1480 = vrcp.pop %v1479
    %v1481 = vmul.f32 1.0, %v1480
    %v1482 = vtanh.pop %v1473
    %v1483 = vmul.f32 %v1481, %v1388
    %1485 = vrot.lane.b32.xlu0 %v1482, 110
    %v1486 = vpop.permute.xlu0 %1485
    %v1488 = vmul.f32 %v1481, %v1486
    %1490 = vrot.lane.b32.xlu0 %v1488, 6
    %v1491 = vpop.permute.xlu0 %1490
    %v1493 = vadd.f32 %v1483, %v1491
    %v1494 = vtanh.pop %v1493
    %1496 = vrot.lane.b32.xlu0 %v1494, 6
    %v1497 = vpop.permute.xlu0 %1496
    %v1499 = vmul.f32 %v1481, %v1497
    %1500 = vrot.lane.b32.xlu0 %v752, 116
    %v1501 = vpop.permute.xlu0 %1500
    %1504 = vrot.lane.b32.xlu0 %v1499, 122
    %v1505 = vpop.permute.xlu0 %1504
    %v1507 = vsel %vm37, %v1501, %v1505
    %v1509 = vsel %vm39, %v1507, 0
    %1511 = vmatprep.subr.mxu0 0.0
    %1512 = vmatpush1.msra.mxu0 %v867
    %1513 = vmatprep.subr.mxu0 0.0
    %1514 = vmatpush1.msra.mxu0 %v879
    %1515 = vmatprep.subr.mxu0 0.0
    %1516 = vmatpush1.msra.mxu0 0.0
    %1517 = vmatprep.subr.mxu0 0.0
    %1518 = vmatpush1.msra.mxu0 0.0
    %1519 = vmatprep.subr.mxu0 0.0
    %1520 = vmatpush1.msra.mxu0 0.0
    %1521 = vmatprep.subr.mxu0 0.0
    %1522 = vmatpush1.msra.mxu0 0.0
    %1523 = vmatprep.subr.mxu0 0.0
    %1524 = vmatpush1.msra.mxu0 0.0
    %1525 = vmatprep.subr.mxu0 0.0
    %1526 = vmatpush1.msra.mxu0 0.0
    %1527 = vmatprep.subr.mxu0 0.0
    %1528 = vmatpush1.msra.mxu0 0.0
    %1529 = vmatprep.subr.mxu0 0.0
    %1530 = vmatpush1.msra.mxu0 0.0
    %1531 = vmatprep.subr.mxu0 0.0
    %1532 = vmatpush1.msra.mxu0 0.0
    %1533 = vmatprep.subr.mxu0 0.0
    %1534 = vmatpush1.msra.mxu0 0.0
    %1535 = vmatprep.subr.mxu0 0.0
    %1536 = vmatpush1.msra.mxu0 0.0
    %1537 = vmatprep.subr.mxu0 0.0
    %1538 = vmatpush1.msra.mxu0 0.0
    %1539 = vmatprep.subr.mxu0 0.0
    %1540 = vmatpush1.msra.mxu0 0.0
    %1541 = vmatprep.subr.mxu0 0.0
    %1542 = vmatpush1.msra.mxu0 0.0
    %1543 = vmatprep.subr.mxu0 0.0
    %1544 = vmatpush1.msra.mxu0 0.0
    %1545 = vmatprep.subr.mxu0 0.0
    %1546 = vmatpush1.msra.mxu0 0.0
    %1547 = vmatprep.subr.mxu0 0.0
    %1548 = vmatpush1.msra.mxu0 0.0
    %1549 = vmatprep.subr.mxu0 0.0
    %1550 = vmatpush1.msra.mxu0 0.0
    %1551 = vmatprep.subr.mxu0 0.0
    %1552 = vmatpush1.msra.mxu0 0.0
    %1553 = vmatprep.subr.mxu0 0.0
    %1554 = vmatpush1.msra.mxu0 0.0
    %1555 = vmatprep.subr.mxu0 0.0
    %1556 = vmatpush1.msra.mxu0 0.0
    %1557 = vmatprep.subr.mxu0 0.0
    %1558 = vmatpush1.msra.mxu0 0.0
    %1559 = vmatprep.subr.mxu0 0.0
    %1560 = vmatpush1.msra.mxu0 0.0
    %1561 = vmatprep.subr.mxu0 0.0
    %1562 = vmatpush1.msra.mxu0 0.0
    %1563 = vmatprep.subr.mxu0 0.0
    %1564 = vmatpush1.msra.mxu0 0.0
    %1565 = vmatprep.subr.mxu0 0.0
    %1566 = vmatpush1.msra.mxu0 0.0
    %1567 = vmatprep.subr.mxu0 0.0
    %1568 = vmatpush1.msra.mxu0 0.0
    %1569 = vmatprep.subr.mxu0 0.0
    %1570 = vmatpush1.msra.mxu0 0.0
    %1571 = vmatprep.subr.mxu0 0.0
    %1572 = vmatpush1.msra.mxu0 0.0
    %1573 = vmatprep.subr.mxu0 0.0
    %1574 = vmatpush1.msra.mxu0 0.0
    %1575 = vmatprep.mubr.f32.mxu0 0.0
    %1576 = vmatmul.mubr.f32.gmra.mrb[0].mxu0 %v1509
    %v1577 = vpop.f32.mrb[0].mxu0
    %v1578 = vadd.f32 %v870, %v1577
    %v1579 = vpop.f32.mrb[0].mxu0
    %1580 = vdwg.mxu0
    %v1581 = vxor.u32 %v1578, 2147483648
    %v1582 = vmul.f32 %v1581, 1.442695
    %v1583 = vpow.pop %v1582
    %v1584 = vadd.f32 %v1583, 1.0
    %v1585 = vrcp.pop %v1584
    %v1586 = vmul.f32 1.0, %v1585
    %v1587 = vtanh.pop %v1578
    %v1588 = vmul.f32 %v1586, %v1493
    %1590 = vrot.lane.b32.xlu0 %v1587, 110
    %v1591 = vpop.permute.xlu0 %1590
    %v1593 = vmul.f32 %v1586, %v1591
    %1595 = vrot.lane.b32.xlu0 %v1593, 6
    %v1596 = vpop.permute.xlu0 %1595
    %v1598 = vadd.f32 %v1588, %v1596
    %v1599 = vtanh.pop %v1598
    %1601 = vrot.lane.b32.xlu0 %v1599, 6
    %v1602 = vpop.permute.xlu0 %1601
    %v1604 = vmul.f32 %v1586, %v1602
    %1606 = vrot.lane.b32.xlu0 %v1604, 122
    %v1607 = vpop.permute.xlu0 %1606
    %v1609 = vsel %vm37, %v857, %v1607
    %v1611 = vsel %vm39, %v1609, 0
    %1613 = vmatprep.subr.mxu0 0.0
    %1614 = vmatpush1.msra.mxu0 %v867
    %1615 = vmatprep.subr.mxu0 0.0
    %1616 = vmatpush1.msra.mxu0 %v879
    %1617 = vmatprep.subr.mxu0 0.0
    %1618 = vmatpush1.msra.mxu0 0.0
    %1619 = vmatprep.subr.mxu0 0.0
    %1620 = vmatpush1.msra.mxu0 0.0
    %1621 = vmatprep.subr.mxu0 0.0
    %1622 = vmatpush1.msra.mxu0 0.0
    %1623 = vmatprep.subr.mxu0 0.0
    %1624 = vmatpush1.msra.mxu0 0.0
    %1625 = vmatprep.subr.mxu0 0.0
    %1626 = vmatpush1.msra.mxu0 0.0
    %1627 = vmatprep.subr.mxu0 0.0
    %1628 = vmatpush1.msra.mxu0 0.0
    %1629 = vmatprep.subr.mxu0 0.0
    %1630 = vmatpush1.msra.mxu0 0.0
    %1631 = vmatprep.subr.mxu0 0.0
    %1632 = vmatpush1.msra.mxu0 0.0
    %1633 = vmatprep.subr.mxu0 0.0
    %1634 = vmatpush1.msra.mxu0 0.0
    %1635 = vmatprep.subr.mxu0 0.0
    %1636 = vmatpush1.msra.mxu0 0.0
    %1637 = vmatprep.subr.mxu0 0.0
    %1638 = vmatpush1.msra.mxu0 0.0
    %1639 = vmatprep.subr.mxu0 0.0
    %1640 = vmatpush1.msra.mxu0 0.0
    %1641 = vmatprep.subr.mxu0 0.0
    %1642 = vmatpush1.msra.mxu0 0.0
    %1643 = vmatprep.subr.mxu0 0.0
    %1644 = vmatpush1.msra.mxu0 0.0
    %1645 = vmatprep.subr.mxu0 0.0
    %1646 = vmatpush1.msra.mxu0 0.0
    %1647 = vmatprep.subr.mxu0 0.0
    %1648 = vmatpush1.msra.mxu0 0.0
    %1649 = vmatprep.subr.mxu0 0.0
    %1650 = vmatpush1.msra.mxu0 0.0
    %1651 = vmatprep.subr.mxu0 0.0
    %1652 = vmatpush1.msra.mxu0 0.0
    %1653 = vmatprep.subr.mxu0 0.0
    %1654 = vmatpush1.msra.mxu0 0.0
    %1655 = vmatprep.subr.mxu0 0.0
    %1656 = vmatpush1.msra.mxu0 0.0
    %1657 = vmatprep.subr.mxu0 0.0
    %1658 = vmatpush1.msra.mxu0 0.0
    %1659 = vmatprep.subr.mxu0 0.0
    %1660 = vmatpush1.msra.mxu0 0.0
    %1661 = vmatprep.subr.mxu0 0.0
    %1662 = vmatpush1.msra.mxu0 0.0
    %1663 = vmatprep.subr.mxu0 0.0
    %1664 = vmatpush1.msra.mxu0 0.0
    %1665 = vmatprep.subr.mxu0 0.0
    %1666 = vmatpush1.msra.mxu0 0.0
    %1667 = vmatprep.subr.mxu0 0.0
    %1668 = vmatpush1.msra.mxu0 0.0
    %1669 = vmatprep.subr.mxu0 0.0
    %1670 = vmatpush1.msra.mxu0 0.0
    %1671 = vmatprep.subr.mxu0 0.0
    %1672 = vmatpush1.msra.mxu0 0.0
    %1673 = vmatprep.subr.mxu0 0.0
    %1674 = vmatpush1.msra.mxu0 0.0
    %1675 = vmatprep.subr.mxu0 0.0
    %1676 = vmatpush1.msra.mxu0 0.0
    %1677 = vmatprep.mubr.f32.mxu0 0.0
    %1678 = vmatmul.mubr.f32.gmra.mrb[0].mxu0 %v1611
    %v1679 = vpop.f32.mrb[0].mxu0
    %v1680 = vadd.f32 %v870, %v1679
    %v1681 = vpop.f32.mrb[0].mxu0
    %1682 = vdwg.mxu0
    %v1683 = vxor.u32 %v1680, 2147483648
    %v1684 = vmul.f32 %v1683, 1.442695
    %v1685 = vpow.pop %v1684
    %v1686 = vadd.f32 %v1685, 1.0
    %v1687 = vrcp.pop %v1686
    %v1688 = vmul.f32 1.0, %v1687
    %v1689 = vtanh.pop %v1680
    %v1690 = vmul.f32 %v1688, %v1598
    %1692 = vrot.lane.b32.xlu0 %v1689, 110
    %v1693 = vpop.permute.xlu0 %1692
    %v1695 = vmul.f32 %v1688, %v1693
    %1697 = vrot.lane.b32.xlu0 %v1695, 6
    %v1698 = vpop.permute.xlu0 %1697
    %v1700 = vadd.f32 %v1690, %v1698
    %v1701 = vtanh.pop %v1700
    %1703 = vrot.lane.b32.xlu0 %v1701, 6
    %v1704 = vpop.permute.xlu0 %1703
    %v1706 = vmul.f32 %v1688, %v1704
    %1708 = vrot.lane.b32.xlu0 %v1706, 116
    %v1709 = vpop.permute.xlu0 %1708
    %s1711 = scalar_lea.vmem [#allocation2], 1
    %1712 = vst.msk [vmem:[%s1711] sm:$0x1] %vm859, %v1709
    %1714 = vrot.lane.b32.xlu0 %v1700, 122
    %v1715 = vpop.permute.xlu0 %1714
    %s1717 = scalar_lea.vmem [#allocation4], 1
    %1718 = vst.msk [vmem:[%s1717] sm:$0x1] %vm859, %v1715
    %1719 = vrot.lane.b32.xlu0 %v974, 116
    %v1720 = vpop.permute.xlu0 %1719
    %1722 = vst.msk [vmem:[%s3] sm:$0x1] %vm859, %v1720
    %1723 = vrot.lane.b32.xlu0 %v1079, 116
    %v1724 = vpop.permute.xlu0 %1723
    %s1726 = scalar_lea.vmem %s3, 1
    %1727 = vst.msk [vmem:[%s1726] sm:$0x1] %vm859, %v1724
    %1728 = vrot.lane.b32.xlu0 %v1184, 116
    %v1729 = vpop.permute.xlu0 %1728
    %s1731 = scalar_lea.vmem %s3, 2
    %1732 = vst.msk [vmem:[%s1731] sm:$0x1] %vm859, %v1729
    %1733 = vrot.lane.b32.xlu0 %v1289, 116
    %v1734 = vpop.permute.xlu0 %1733
    %s1736 = scalar_lea.vmem %s3, 3
    %1737 = vst.msk [vmem:[%s1736] sm:$0x1] %vm859, %v1734
    %1738 = vrot.lane.b32.xlu0 %v1394, 116
    %v1739 = vpop.permute.xlu0 %1738
    %s1741 = scalar_lea.vmem %s3, 4
    %1742 = vst.msk [vmem:[%s1741] sm:$0x1] %vm859, %v1739
    %1743 = vrot.lane.b32.xlu0 %v1499, 116
    %v1744 = vpop.permute.xlu0 %1743
    %s1746 = scalar_lea.vmem %s3, 5
    %1747 = vst.msk [vmem:[%s1746] sm:$0x1] %vm859, %v1744
    %1748 = vrot.lane.b32.xlu0 %v1604, 116
    %v1749 = vpop.permute.xlu0 %1748
    %s1751 = scalar_lea.vmem %s3, 6
    %1752 = vst.msk [vmem:[%s1751] sm:$0x1] %vm859, %v1749
    %s1753 = scalar_lea.vmem %s3, 7
    %1754 = vst.msk [vmem:[%s1753] sm:$0x1] %vm859, %v1709
    // Predicated region
    $region14: #{tpu_custom_call.1} parent=1 // pred_check
      _
    $region15: #{tpu_custom_call.1} parent=1 // pred_check_branch
      %1756 = sbr.rel (0) target = $region17
    $region16: #{tpu_custom_call.1} parent=1 // pred_region
      _
    $region17: #{tpu_custom_call.1} parent=1 // pred_fallthru
      _
    // Predicated region
    $region18: #{tpu_custom_call.1} parent=1 // pred_check
      _
    $region19: #{tpu_custom_call.1} parent=1 // pred_check_branch
      %1758 = sbr.rel (0) target = $region21
    $region20: #{tpu_custom_call.1} parent=1 // pred_region
      %s1760 = ssub.s32 32, 32
      %1761 = vsyncadd [#allocation3], %s1760
      %s1762 = sshll.u32 [#allocation2], 4
      %s1763 = int_to_ptr.vmem [resolvable:$true] %s1762
      %1768 = dma.vmem_to_hbm [thread:$0]  %s1763, 32, %s4, [#allocation3], 16, 16, 1
    $region21: #{tpu_custom_call.1} parent=1 // pred_fallthru
      _
    // Predicated region
    $region22: #{tpu_custom_call.1} parent=1 // pred_check
      _
    $region23: #{tpu_custom_call.1} parent=1 // pred_check_branch
      %1770 = sbr.rel (0) target = $region25
    $region24: #{tpu_custom_call.1} parent=1 // pred_region
      %s1772 = ssub.s32 32, 32
      %1773 = vsyncadd [#allocation5], %s1772
      %s1774 = sshll.u32 [#allocation4], 4
      %s1775 = int_to_ptr.vmem [resolvable:$true] %s1774
      %1780 = dma.vmem_to_hbm [thread:$0]  %s1775, 32, %s5, [#allocation5], 16, 16, 1
    $region25: #{tpu_custom_call.1} parent=1 // pred_fallthru
      _
    // Predicated region
    $region26: #{tpu_custom_call.1} parent=1 // pred_check
      _
    $region27: #{tpu_custom_call.1} parent=1 // pred_check_branch
      %1782 = sbr.rel (0) target = $region29
    $region28: #{tpu_custom_call.1} parent=1 // pred_region
      _
    $region29: #{tpu_custom_call.1} parent=1 // pred_fallthru
      _
    // Predicated region
    $region30: #{tpu_custom_call.1} parent=1 // pred_check
      _
    $region31: #{tpu_custom_call.1} parent=1 // pred_check_branch
      %1784 = sbr.rel (0) target = $region33
    $region32: #{tpu_custom_call.1} parent=1 // pred_region
      %1785 = dma.done [#allocation3], 32
    $region33: #{tpu_custom_call.1} parent=1 // pred_fallthru
      _
    // Predicated region
    $region34: #{tpu_custom_call.1} parent=1 // pred_check
      _
    $region35: #{tpu_custom_call.1} parent=1 // pred_check_branch
      %1787 = sbr.rel (0) target = $region37
    $region36: #{tpu_custom_call.1} parent=1 // pred_region
      %1788 = dma.done [#allocation5], 32
    $region37: #{tpu_custom_call.1} parent=1 // pred_fallthru
      _
    %1789 = vsyncpa [#allocation3], 1
    %1790 = vsyncpa [#allocation5], 1

</llo_original>
